<compile_context>
chip_gen: v7x
topology: tpu7x:2x2x1
jax: 0.10.0
libtpu: 0.0.40
codegen_flags: <defaults>
</compile_context>

<pallas_src>
import math

import jax
import jax.numpy as jnp
from jax.experimental import pallas as pl
from jax.experimental.pallas import tpu as pltpu


def _round_up(x, m):
    return ((x + m - 1) // m) * m


def _make_tcblock_kernel(bt, T_pad, in_dim, in_pad, filters, n_pad, c_pad,
                         dilations, k_sizes, has_shift, compute_dtype):
    """Build the fused TCBlock kernel (block loop unrolled at trace time)."""
    M = bt * T_pad
    F = filters
    Np = n_pad
    n_flat = 2 * len(dilations)          # (fused weight, fused bias) per block

    def kernel(x_ref, *rest):
        param_refs = rest[:n_flat]
        o_ref = rest[n_flat]             # (M, c_pad) f32: output block reused
                                         # as the running feature map.

        # ---- init: one lane-dense copy of the narrow input block plus one
        # lane-aligned zero fill of the remaining channel lanes.
        o_ref[:, :in_pad] = x_ref[...]
        if c_pad > in_pad:
            o_ref[:, in_pad:] = jnp.zeros((M, c_pad - in_pad), jnp.float32)

        # Per-row time index within each sample (hoisted out of the loop).
        t_idx = jax.lax.broadcasted_iota(jnp.int32, (M, 1), 0) % T_pad

        cur = in_dim
        for i, d in enumerate(dilations):
            k_i = k_sizes[i]                 # lane-aligned K for this block
            w = param_refs[2 * i][...]       # (k_i, 4*Np) or (k_i, 2*Np)
            b = param_refs[2 * i + 1][...]   # (1, 2*Np) = [bf_pad | bg_pad]

            x_mm = o_ref[:, :k_i]            # lane-aligned feature-map slice
            if compute_dtype != jnp.float32:
                x_mm = x_mm.astype(compute_dtype)

            # Single fused matmul: both taps, both branches.
            y = jnp.dot(x_mm, w, preferred_element_type=jnp.float32)

            if has_shift[i]:
                # Shift the matmul *output* instead of the wide feature map:
                #   (x[t-d] @ W0) == (x @ W0)[t-d].  All splits are at
                # 128-lane boundaries (Np-padded), hence vreg-clean.
                y0 = y[:, :2 * Np]
                y1 = y[:, 2 * Np:]
                y0 = jnp.where(t_idx >= d, jnp.roll(y0, d, axis=0), 0.0)
                xfg = y0 + y1 + b
            else:
                # Dilation reaches past the sequence: shifted tap is all
                # zeros -> that half of the weight was dropped statically.
                xfg = y + b

            # Pad lanes of xf/xg are exactly 0 -> act pad lanes are 0 too.
            act = jnp.tanh(xfg[:, :Np]) * jax.nn.sigmoid(xfg[:, Np:])
            # In-place channel append (compact layout; small masked store).
            o_ref[:, cur:cur + F] = act[:, :F]
            cur += F

    return kernel


def tcblock_pallas(x_nct, params, filters, *, compute_dtype=jnp.float32,
                   block_batch=None):
    """Run TCBlock.

    Args:
      x_nct: (B, C, T) float32, PyTorch NCT layout.
      params: list of (wf, bf, wg, bg) per dense block;
              wf/wg: (2, C_i, filters)  (kernel-tap, in-channel, out-channel),
              bf/bg: (1, filters).
      filters: number of filters per dense block.
      compute_dtype: dtype for MXU inputs (jnp.bfloat16 recommended on
              v6e/v7x at production sizes; accumulation stays f32).
      block_batch: batch elements per grid step (default: auto).

    Returns:
      (B, out_dim, T) float32, NCT layout.
    """
    B, in_dim, T = x_nct.shape
    n_blocks = len(params)
    dilations = [2 ** i for i in range(n_blocks)]
    F = filters
    out_dim = in_dim + n_blocks * F

    T_pad = _round_up(T, 8)               # sublane-aligned rows per sample
    in_pad = _round_up(in_dim, 128)        # narrow, lane-dense input DMA
    c_pad = max(_round_up(out_dim, 128), in_pad)   # full feature-map width
    Np = _round_up(F, 128)                 # lane-aligned per-branch matmul N

    # Batch chunk: target ~512 matmul rows per step, but keep >= 2 grid steps
    # whenever B > 1 so the "parallel" axis can split across v7x's two TCs.
    if block_batch is None:
        block_batch = max(1, min(B, max(1, 512 // T_pad)))
        if B > 1 and -(-B // block_batch) < 2:
            block_batch = max(1, (B + 1) // 2)
    bt = block_batch
    grid_b = -(-B // bt)                   # cdiv
    B_pad = grid_b * bt
    M = bt * T_pad

    # NCT -> channels-last, flattened (B*T) rows, narrow channel padding only.
    x_btc = jnp.transpose(x_nct, (0, 2, 1)).astype(jnp.float32)
    x_btc = jnp.pad(x_btc, ((0, B_pad - B), (0, T_pad - T),
                            (0, in_pad - in_dim)))
    x2d = x_btc.reshape(B_pad * T_pad, in_pad)

    # Pack parameters: per block one fused weight [W0f|W0g|W1f|W1g] (or
    # [W1f|W1g] when the shifted tap is statically zero) with each branch
    # padded to Np lanes and K zero-padded to the lane-aligned running width,
    # plus one fused bias [bf|bg] padded the same way.
    flat_params = []
    k_sizes = []
    has_shift = []
    cur = in_dim
    for i, (wf, bf, wg, bg) in enumerate(params):
        d = dilations[i]
        k_i = min(_round_up(cur, 128), c_pad)
        k_sizes.append(k_i)
        shift = d < T_pad
        has_shift.append(shift)

        def _pad_tap(w_tap, _cur=cur, _k=k_i):     # (cur, F) -> (k_i, Np)
            return jnp.pad(w_tap.astype(jnp.float32),
                           ((0, _k - _cur), (0, Np - F)))

        w1 = jnp.concatenate([_pad_tap(wf[1]), _pad_tap(wg[1])], axis=1)
        if shift:
            w0 = jnp.concatenate([_pad_tap(wf[0]), _pad_tap(wg[0])], axis=1)
            w_all = jnp.concatenate([w0, w1], axis=1)        # (k_i, 4*Np)
        else:
            w_all = w1                                       # (k_i, 2*Np)
        b_all = jnp.concatenate(
            [jnp.pad(bf.astype(jnp.float32), ((0, 0), (0, Np - F))),
             jnp.pad(bg.astype(jnp.float32), ((0, 0), (0, Np - F)))], axis=1)
        flat_params += [w_all.astype(compute_dtype), b_all]
        cur += F

    kernel = _make_tcblock_kernel(bt, T_pad, in_dim, in_pad, F, Np, c_pad,
                                  dilations, k_sizes, has_shift, compute_dtype)

    # Weights/biases: constant index map -> pipeline keeps them resident and
    # never re-issues their DMA across grid steps.
    def _const_full_spec(arr):
        nd = arr.ndim
        return pl.BlockSpec(arr.shape, lambda b, _nd=nd: (0,) * _nd)

    in_specs = [pl.BlockSpec((M, in_pad), lambda b: (b, 0))]
    in_specs += [_const_full_spec(p) for p in flat_params]

    # VMEM budget: double-buffered I/O blocks + (double-buffered) params +
    # per-block matmul temporaries; clamp to 75% of physical per-core VMEM
    # (48 MiB on v7x, ~96 MiB on v5e/v6e).
    w_bytes = sum(int(p.size) * p.dtype.itemsize for p in flat_params)
    io_bytes = 2 * (M * in_pad * 4) + 2 * (M * c_pad * 4)
    tmp_bytes = M * (c_pad * jnp.dtype(compute_dtype).itemsize + 8 * Np * 4)
    vmem_est = io_bytes + 2 * w_bytes + tmp_bytes
    try:
        vmem_cap = int(pltpu.get_tpu_info().vmem_capacity_bytes)
    except Exception:
        vmem_cap = 64 * 2 ** 20
    vmem_limit = int(min(int(0.75 * vmem_cap),
                         max(32 * 2 ** 20, 2 * vmem_est)))

    out = pl.pallas_call(
        kernel,
        out_shape=jax.ShapeDtypeStruct((B_pad * T_pad, c_pad), jnp.float32),
        grid_spec=pltpu.PrefetchScalarGridSpec(
            num_scalar_prefetch=0,
            grid=(grid_b,),
            in_specs=in_specs,
            out_specs=pl.BlockSpec((M, c_pad), lambda b: (b, 0)),
        ),
        compiler_params=pltpu.CompilerParams(
            dimension_semantics=("parallel",),
            vmem_limit_bytes=vmem_limit,
        ),
    )(x2d, *flat_params)

    # Drop batch/time/lane padding and go back to (B, C_out, T).
    out = out.reshape(B_pad, T_pad, c_pad)[:B, :T, :out_dim]
    return jnp.transpose(out, (0, 2, 1))


def tcblock_reference(x_nct, params, filters):
    """Pure-JAX reference of TCBlock (for correctness check)."""
    x = jnp.transpose(x_nct, (0, 2, 1))  # (B, T, C)
    T = x.shape[1]
    for i, (wf, bf, wg, bg) in enumerate(params):
        d = 2 ** i
        x_shift = jnp.pad(x, ((0, 0), (d, 0), (0, 0)))[:, :T, :]
        xf = (jnp.einsum("btc,cf->btf", x_shift, wf[0])
              + jnp.einsum("btc,cf->btf", x, wf[1]) + bf)
        xg = (jnp.einsum("btc,cf->btf", x_shift, wg[0])
              + jnp.einsum("btc,cf->btf", x, wg[1]) + bg)
        act = jnp.tanh(xf) * jax.nn.sigmoid(xg)
        x = jnp.concatenate([x, act], axis=-1)
    return jnp.transpose(x, (0, 2, 1))


def init_tcblock_params(key, in_dim, seq_len, filters):
    """Deterministic parameter init matching TCBlock.__init__ shapes.

    PyTorch Conv1d weight (F, C, 2) / bias (F,) are stored here as
    wf/wg: (2, C, F) (tap-major, transposed for channels-last matmul) and
    bf/bg: (1, F).
    """
    ms = math.ceil(math.log2(seq_len + 1))
    params = []
    cur_dim = in_dim
    for _ in range(ms):
        k0, k1, k2, k3, key = jax.random.split(key, 5)
        scale = 1.0 / math.sqrt(cur_dim * 2)  # Conv1d default-ish fan-in scale
        wf = jax.random.uniform(k0, (2, cur_dim, filters), jnp.float32,
                                -scale, scale)
        bf = jax.random.uniform(k1, (1, filters), jnp.float32, -scale, scale)
        wg = jax.random.uniform(k2, (2, cur_dim, filters), jnp.float32,
                                -scale, scale)
        bg = jax.random.uniform(k3, (1, filters), jnp.float32, -scale, scale)
        params.append((wf, bf, wg, bg))
        cur_dim += filters
    return params, cur_dim


if __name__ == "__main__":
    # Small shapes consistent with the module's forward: x is (B, C, T).
    B, in_dim, T = 2, 8, 8
    filters = 8
    seq_len = T  # TCBlock(seq_len=T) -> ms = ceil(log2(9)) = 4 dense blocks

    key = jax.random.PRNGKey(0)
    kx, kp = jax.random.split(key)
    x = jax.random.normal(kx, (B, in_dim, T), jnp.float32)

    params, out_dim = init_tcblock_params(kp, in_dim, seq_len, filters)

    y = tcblock_pallas(x, params, filters)
    y = jax.block_until_ready(y)

    y_ref = tcblock_reference(x, params, filters)
    assert y.shape == (B, out_dim, T), (y.shape, (B, out_dim, T))
    assert jnp.allclose(y, y_ref, atol=1e-5, rtol=1e-5), (
        float(jnp.max(jnp.abs(y - y_ref)))
    )

    print("KERNEL_OK")
</pallas_src>

<mosaic_0001>
module attributes {stable_mosaic.version = 11 : i64} {
  func.func @kernel(%arg0: i32, %arg1: memref<8x128xf32, #tpu.memory_space<vmem>>, %arg2: memref<128x512xf32, #tpu.memory_space<vmem>>, %arg3: memref<1x256xf32, #tpu.memory_space<vmem>>, %arg4: memref<128x512xf32, #tpu.memory_space<vmem>>, %arg5: memref<1x256xf32, #tpu.memory_space<vmem>>, %arg6: memref<128x512xf32, #tpu.memory_space<vmem>>, %arg7: memref<1x256xf32, #tpu.memory_space<vmem>>, %arg8: memref<128x256xf32, #tpu.memory_space<vmem>>, %arg9: memref<1x256xf32, #tpu.memory_space<vmem>>, %arg10: memref<8x128xf32, #tpu.memory_space<vmem>>) attributes {dimension_semantics = [#tpu.dimension_semantics<parallel>], iteration_bounds = array<i64: 2>, scalar_prefetch = 0 : i64, scratch_operands = 0 : i64, tpu.core_type = #tpu.core_type<tc>, window_params = [{transform_indices = @transform_0, window_bounds = array<i64: 8, 128>}, {pipeline_mode = #tpu.pipeline_mode<synchronous>, transform_indices = @transform_1, window_bounds = array<i64: 128, 512>}, {pipeline_mode = #tpu.pipeline_mode<synchronous>, transform_indices = @transform_2, window_bounds = array<i64: 1, 256>}, {pipeline_mode = #tpu.pipeline_mode<synchronous>, transform_indices = @transform_3, window_bounds = array<i64: 128, 512>}, {pipeline_mode = #tpu.pipeline_mode<synchronous>, transform_indices = @transform_4, window_bounds = array<i64: 1, 256>}, {pipeline_mode = #tpu.pipeline_mode<synchronous>, transform_indices = @transform_5, window_bounds = array<i64: 128, 512>}, {pipeline_mode = #tpu.pipeline_mode<synchronous>, transform_indices = @transform_6, window_bounds = array<i64: 1, 256>}, {pipeline_mode = #tpu.pipeline_mode<synchronous>, transform_indices = @transform_7, window_bounds = array<i64: 128, 256>}, {pipeline_mode = #tpu.pipeline_mode<synchronous>, transform_indices = @transform_8, window_bounds = array<i64: 1, 256>}, {transform_indices = @transform_9, window_bounds = array<i64: 8, 128>}]} {
    %c0 = arith.constant 0 : index
    %c0_0 = arith.constant 0 : index
    %0 = vector.load %arg1[%c0, %c0_0] : memref<8x128xf32, #tpu.memory_space<vmem>>, vector<8x128xf32>
    %c0_1 = arith.constant 0 : index
    %c0_2 = arith.constant 0 : index
    %1 = vector.load %arg10[%c0_1, %c0_2] : memref<8x128xf32, #tpu.memory_space<vmem>>, vector<8x128xf32>
    tpu.vector_store %arg10[%c0_1, %c0_2], %0 {strides = array<i32>} : memref<8x128xf32, #tpu.memory_space<vmem>>, vector<8x128xf32>,
    %2 = tpu.iota {dimensions = array<i32: 0>} : vector<8x1xi32>
    %c8_i32 = arith.constant 8 : i32
    %c0_i32 = arith.constant 0 : i32
    %3 = arith.cmpi eq, %c8_i32, %c0_i32 : i32
    %c1_i32 = arith.constant 1 : i32
    %4 = arith.select %3, %c1_i32, %c8_i32 : i32
    %5 = vector.broadcast %4 : i32 to vector<8x1xi32>
    %6 = arith.remsi %2, %5 : vector<8x1xi32>
    %c0_i32_3 = arith.constant 0 : i32
    %7 = vector.broadcast %c0_i32_3 : i32 to vector<8x1xi32>
    %8 = arith.cmpi ne, %6, %7 : vector<8x1xi32>
    %c0_i32_4 = arith.constant 0 : i32
    %9 = vector.broadcast %c0_i32_4 : i32 to vector<8x1xi32>
    %10 = arith.cmpi slt, %6, %9 : vector<8x1xi32>
    %c0_i32_5 = arith.constant 0 : i32
    %11 = arith.cmpi slt, %4, %c0_i32_5 : i32
    %12 = vector.broadcast %11 : i1 to vector<8x1xi1>
    %13 = vector.broadcast %12 : vector<8x1xi1> to vector<8x1xi1>
    %14 = arith.xori %10, %13 : vector<8x1xi1>
    %15 = arith.andi %14, %8 : vector<8x1xi1>
    %16 = vector.broadcast %4 : i32 to vector<8x1xi32>
    %17 = arith.addi %6, %16 : vector<8x1xi32>
    %18 = arith.select %15, %17, %6 : vector<8x1xi1>, vector<8x1xi32>
    %c0_6 = arith.constant 0 : index
    %c0_7 = arith.constant 0 : index
    %19 = vector.load %arg2[%c0_6, %c0_7] : memref<128x512xf32, #tpu.memory_space<vmem>>, vector<128x512xf32>
    %c0_8 = arith.constant 0 : index
    %c0_9 = arith.constant 0 : index
    %20 = vector.load %arg3[%c0_8, %c0_9] : memref<1x256xf32, #tpu.memory_space<vmem>>, vector<1x256xf32>
    %c0_10 = arith.constant 0 : index
    %c0_11 = arith.constant 0 : index
    %21 = vector.load %arg10[%c0_10, %c0_11] : memref<8x128xf32, #tpu.memory_space<vmem>>, vector<8x128xf32>
    %cst = arith.constant dense<0.000000e+00> : vector<8x512xf32>
    %22 = tpu.matmul %21, %19, %cst {dimension_numbers = #tpu.dot_dimension_numbers<[1], [0], [0], [1], [0, 0, 1, 1], [], []>} : vector<8x128xf32>, vector<128x512xf32>, vector<8x512xf32> -> vector<8x512xf32>
    %23 = vector.extract_strided_slice %22 {offsets = [0, 0], sizes = [8, 256], strides = [1, 1]} : vector<8x512xf32> to vector<8x256xf32>
    %24 = vector.extract_strided_slice %22 {offsets = [0, 256], sizes = [8, 256], strides = [1, 1]} : vector<8x512xf32> to vector<8x256xf32>
    %c1_i32_12 = arith.constant 1 : i32
    %25 = vector.broadcast %c1_i32_12 : i32 to vector<8x1xi32>
    %26 = arith.cmpi sge, %18, %25 : vector<8x1xi32>
    %27 = vector.extract_strided_slice %23 {offsets = [7, 0], sizes = [1, 256], strides = [1, 1]} : vector<8x256xf32> to vector<1x256xf32>
    %28 = vector.extract_strided_slice %23 {offsets = [0, 0], sizes = [7, 256], strides = [1, 1]} : vector<8x256xf32> to vector<7x256xf32>
    %29 = tpu.concatenate %27, %28 in 0 : vector<1x256xf32>, vector<7x256xf32> -> vector<8x256xf32>
    %cst_13 = arith.constant 0.000000e+00 : f32
    %30 = vector.shape_cast %26 : vector<8x1xi1> to vector<8x1xi1>
    %31 = vector.broadcast %30 : vector<8x1xi1> to vector<8x256xi1>
    %32 = vector.broadcast %cst_13 : f32 to vector<8x256xf32>
    %33 = arith.select %31, %29, %32 : vector<8x256xi1>, vector<8x256xf32>
    %34 = arith.addf %33, %24 : vector<8x256xf32>
    %35 = vector.broadcast %20 : vector<1x256xf32> to vector<8x256xf32>
    %36 = arith.addf %34, %35 : vector<8x256xf32>
    %37 = vector.extract_strided_slice %36 {offsets = [0, 0], sizes = [8, 128], strides = [1, 1]} : vector<8x256xf32> to vector<8x128xf32>
    %38 = math.tanh %37 : vector<8x128xf32>
    %39 = vector.extract_strided_slice %36 {offsets = [0, 128], sizes = [8, 128], strides = [1, 1]} : vector<8x256xf32> to vector<8x128xf32>
    %40 = arith.negf %39 : vector<8x128xf32>
    %41 = math.exp %40 : vector<8x128xf32>
    %cst_14 = arith.constant 1.000000e+00 : f32
    %42 = vector.broadcast %cst_14 : f32 to vector<8x128xf32>
    %43 = arith.addf %42, %41 : vector<8x128xf32>
    %44 = arith.divf %42, %43 : vector<8x128xf32>
    %45 = arith.mulf %38, %44 : vector<8x128xf32>
    %46 = vector.extract_strided_slice %45 {offsets = [0, 0], sizes = [8, 8], strides = [1, 1]} : vector<8x128xf32> to vector<8x8xf32>
    %c0_15 = arith.constant 0 : index
    %c8 = arith.constant 8 : index
    %47 = vector.load %arg10[%c0_15, %c8] : memref<8x128xf32, #tpu.memory_space<vmem>>, vector<8x8xf32>
    tpu.vector_store %arg10[%c0_15, %c8], %46 {strides = array<i32>} : memref<8x128xf32, #tpu.memory_space<vmem>>, vector<8x8xf32>,
    %c0_16 = arith.constant 0 : index
    %c0_17 = arith.constant 0 : index
    %48 = vector.load %arg4[%c0_16, %c0_17] : memref<128x512xf32, #tpu.memory_space<vmem>>, vector<128x512xf32>
    %c0_18 = arith.constant 0 : index
    %c0_19 = arith.constant 0 : index
    %49 = vector.load %arg5[%c0_18, %c0_19] : memref<1x256xf32, #tpu.memory_space<vmem>>, vector<1x256xf32>
    %c0_20 = arith.constant 0 : index
    %c0_21 = arith.constant 0 : index
    %50 = vector.load %arg10[%c0_20, %c0_21] : memref<8x128xf32, #tpu.memory_space<vmem>>, vector<8x128xf32>
    %cst_22 = arith.constant dense<0.000000e+00> : vector<8x512xf32>
    %51 = tpu.matmul %50, %48, %cst_22 {dimension_numbers = #tpu.dot_dimension_numbers<[1], [0], [0], [1], [0, 0, 1, 1], [], []>} : vector<8x128xf32>, vector<128x512xf32>, vector<8x512xf32> -> vector<8x512xf32>
    %52 = vector.extract_strided_slice %51 {offsets = [0, 0], sizes = [8, 256], strides = [1, 1]} : vector<8x512xf32> to vector<8x256xf32>
    %53 = vector.extract_strided_slice %51 {offsets = [0, 256], sizes = [8, 256], strides = [1, 1]} : vector<8x512xf32> to vector<8x256xf32>
    %c2_i32 = arith.constant 2 : i32
    %54 = vector.broadcast %c2_i32 : i32 to vector<8x1xi32>
    %55 = arith.cmpi sge, %18, %54 : vector<8x1xi32>
    %56 = vector.extract_strided_slice %52 {offsets = [6, 0], sizes = [2, 256], strides = [1, 1]} : vector<8x256xf32> to vector<2x256xf32>
    %57 = vector.extract_strided_slice %52 {offsets = [0, 0], sizes = [6, 256], strides = [1, 1]} : vector<8x256xf32> to vector<6x256xf32>
    %58 = tpu.concatenate %56, %57 in 0 : vector<2x256xf32>, vector<6x256xf32> -> vector<8x256xf32>
    %cst_23 = arith.constant 0.000000e+00 : f32
    %59 = vector.shape_cast %55 : vector<8x1xi1> to vector<8x1xi1>
    %60 = vector.broadcast %59 : vector<8x1xi1> to vector<8x256xi1>
    %61 = vector.broadcast %cst_23 : f32 to vector<8x256xf32>
    %62 = arith.select %60, %58, %61 : vector<8x256xi1>, vector<8x256xf32>
    %63 = arith.addf %62, %53 : vector<8x256xf32>
    %64 = vector.broadcast %49 : vector<1x256xf32> to vector<8x256xf32>
    %65 = arith.addf %63, %64 : vector<8x256xf32>
    %66 = vector.extract_strided_slice %65 {offsets = [0, 0], sizes = [8, 128], strides = [1, 1]} : vector<8x256xf32> to vector<8x128xf32>
    %67 = math.tanh %66 : vector<8x128xf32>
    %68 = vector.extract_strided_slice %65 {offsets = [0, 128], sizes = [8, 128], strides = [1, 1]} : vector<8x256xf32> to vector<8x128xf32>
    %69 = arith.negf %68 : vector<8x128xf32>
    %70 = math.exp %69 : vector<8x128xf32>
    %cst_24 = arith.constant 1.000000e+00 : f32
    %71 = vector.broadcast %cst_24 : f32 to vector<8x128xf32>
    %72 = arith.addf %71, %70 : vector<8x128xf32>
    %73 = arith.divf %71, %72 : vector<8x128xf32>
    %74 = arith.mulf %67, %73 : vector<8x128xf32>
    %75 = vector.extract_strided_slice %74 {offsets = [0, 0], sizes = [8, 8], strides = [1, 1]} : vector<8x128xf32> to vector<8x8xf32>
    %c0_25 = arith.constant 0 : index
    %c16 = arith.constant 16 : index
    %76 = vector.load %arg10[%c0_25, %c16] : memref<8x128xf32, #tpu.memory_space<vmem>>, vector<8x8xf32>
    tpu.vector_store %arg10[%c0_25, %c16], %75 {strides = array<i32>} : memref<8x128xf32, #tpu.memory_space<vmem>>, vector<8x8xf32>,
    %c0_26 = arith.constant 0 : index
    %c0_27 = arith.constant 0 : index
    %77 = vector.load %arg6[%c0_26, %c0_27] : memref<128x512xf32, #tpu.memory_space<vmem>>, vector<128x512xf32>
    %c0_28 = arith.constant 0 : index
    %c0_29 = arith.constant 0 : index
    %78 = vector.load %arg7[%c0_28, %c0_29] : memref<1x256xf32, #tpu.memory_space<vmem>>, vector<1x256xf32>
    %c0_30 = arith.constant 0 : index
    %c0_31 = arith.constant 0 : index
    %79 = vector.load %arg10[%c0_30, %c0_31] : memref<8x128xf32, #tpu.memory_space<vmem>>, vector<8x128xf32>
    %cst_32 = arith.constant dense<0.000000e+00> : vector<8x512xf32>
    %80 = tpu.matmul %79, %77, %cst_32 {dimension_numbers = #tpu.dot_dimension_numbers<[1], [0], [0], [1], [0, 0, 1, 1], [], []>} : vector<8x128xf32>, vector<128x512xf32>, vector<8x512xf32> -> vector<8x512xf32>
    %81 = vector.extract_strided_slice %80 {offsets = [0, 0], sizes = [8, 256], strides = [1, 1]} : vector<8x512xf32> to vector<8x256xf32>
    %82 = vector.extract_strided_slice %80 {offsets = [0, 256], sizes = [8, 256], strides = [1, 1]} : vector<8x512xf32> to vector<8x256xf32>
    %c4_i32 = arith.constant 4 : i32
    %83 = vector.broadcast %c4_i32 : i32 to vector<8x1xi32>
    %84 = arith.cmpi sge, %18, %83 : vector<8x1xi32>
    %85 = vector.extract_strided_slice %81 {offsets = [4, 0], sizes = [4, 256], strides = [1, 1]} : vector<8x256xf32> to vector<4x256xf32>
    %86 = vector.extract_strided_slice %81 {offsets = [0, 0], sizes = [4, 256], strides = [1, 1]} : vector<8x256xf32> to vector<4x256xf32>
    %87 = tpu.concatenate %85, %86 in 0 : vector<4x256xf32>, vector<4x256xf32> -> vector<8x256xf32>
    %cst_33 = arith.constant 0.000000e+00 : f32
    %88 = vector.shape_cast %84 : vector<8x1xi1> to vector<8x1xi1>
    %89 = vector.broadcast %88 : vector<8x1xi1> to vector<8x256xi1>
    %90 = vector.broadcast %cst_33 : f32 to vector<8x256xf32>
    %91 = arith.select %89, %87, %90 : vector<8x256xi1>, vector<8x256xf32>
    %92 = arith.addf %91, %82 : vector<8x256xf32>
    %93 = vector.broadcast %78 : vector<1x256xf32> to vector<8x256xf32>
    %94 = arith.addf %92, %93 : vector<8x256xf32>
    %95 = vector.extract_strided_slice %94 {offsets = [0, 0], sizes = [8, 128], strides = [1, 1]} : vector<8x256xf32> to vector<8x128xf32>
    %96 = math.tanh %95 : vector<8x128xf32>
    %97 = vector.extract_strided_slice %94 {offsets = [0, 128], sizes = [8, 128], strides = [1, 1]} : vector<8x256xf32> to vector<8x128xf32>
    %98 = arith.negf %97 : vector<8x128xf32>
    %99 = math.exp %98 : vector<8x128xf32>
    %cst_34 = arith.constant 1.000000e+00 : f32
    %100 = vector.broadcast %cst_34 : f32 to vector<8x128xf32>
    %101 = arith.addf %100, %99 : vector<8x128xf32>
    %102 = arith.divf %100, %101 : vector<8x128xf32>
    %103 = arith.mulf %96, %102 : vector<8x128xf32>
    %104 = vector.extract_strided_slice %103 {offsets = [0, 0], sizes = [8, 8], strides = [1, 1]} : vector<8x128xf32> to vector<8x8xf32>
    %c0_35 = arith.constant 0 : index
    %c24 = arith.constant 24 : index
    %105 = vector.load %arg10[%c0_35, %c24] : memref<8x128xf32, #tpu.memory_space<vmem>>, vector<8x8xf32>
    tpu.vector_store %arg10[%c0_35, %c24], %104 {strides = array<i32>} : memref<8x128xf32, #tpu.memory_space<vmem>>, vector<8x8xf32>,
    %c0_36 = arith.constant 0 : index
    %c0_37 = arith.constant 0 : index
    %106 = vector.load %arg8[%c0_36, %c0_37] : memref<128x256xf32, #tpu.memory_space<vmem>>, vector<128x256xf32>
    %c0_38 = arith.constant 0 : index
    %c0_39 = arith.constant 0 : index
    %107 = vector.load %arg9[%c0_38, %c0_39] : memref<1x256xf32, #tpu.memory_space<vmem>>, vector<1x256xf32>
    %c0_40 = arith.constant 0 : index
    %c0_41 = arith.constant 0 : index
    %108 = vector.load %arg10[%c0_40, %c0_41] : memref<8x128xf32, #tpu.memory_space<vmem>>, vector<8x128xf32>
    %cst_42 = arith.constant dense<0.000000e+00> : vector<8x256xf32>
    %109 = tpu.matmul %108, %106, %cst_42 {dimension_numbers = #tpu.dot_dimension_numbers<[1], [0], [0], [1], [0, 0, 1, 1], [], []>} : vector<8x128xf32>, vector<128x256xf32>, vector<8x256xf32> -> vector<8x256xf32>
    %110 = vector.broadcast %107 : vector<1x256xf32> to vector<8x256xf32>
    %111 = arith.addf %109, %110 : vector<8x256xf32>
    %112 = vector.extract_strided_slice %111 {offsets = [0, 0], sizes = [8, 128], strides = [1, 1]} : vector<8x256xf32> to vector<8x128xf32>
    %113 = math.tanh %112 : vector<8x128xf32>
    %114 = vector.extract_strided_slice %111 {offsets = [0, 128], sizes = [8, 128], strides = [1, 1]} : vector<8x256xf32> to vector<8x128xf32>
    %115 = arith.negf %114 : vector<8x128xf32>
    %116 = math.exp %115 : vector<8x128xf32>
    %cst_43 = arith.constant 1.000000e+00 : f32
    %117 = vector.broadcast %cst_43 : f32 to vector<8x128xf32>
    %118 = arith.addf %117, %116 : vector<8x128xf32>
    %119 = arith.divf %117, %118 : vector<8x128xf32>
    %120 = arith.mulf %113, %119 : vector<8x128xf32>
    %121 = vector.extract_strided_slice %120 {offsets = [0, 0], sizes = [8, 8], strides = [1, 1]} : vector<8x128xf32> to vector<8x8xf32>
    %c0_44 = arith.constant 0 : index
    %c32 = arith.constant 32 : index
    %122 = vector.load %arg10[%c0_44, %c32] : memref<8x128xf32, #tpu.memory_space<vmem>>, vector<8x8xf32>
    tpu.vector_store %arg10[%c0_44, %c32], %121 {strides = array<i32>} : memref<8x128xf32, #tpu.memory_space<vmem>>, vector<8x8xf32>,
    return
  }
  func.func @transform_0(%arg0: i32) -> (i32, i32) {
    %c0_i32 = arith.constant 0 : i32
    %c0_i32_0 = arith.constant 0 : i32
    return %arg0, %c0_i32 : i32, i32
  }
  func.func @transform_1(%arg0: i32) -> (i32, i32) {
    %c0_i32 = arith.constant 0 : i32
    %c0_i32_0 = arith.constant 0 : i32
    %c0_i32_1 = arith.constant 0 : i32
    return %c0_i32, %c0_i32_0 : i32, i32
  }
  func.func @transform_2(%arg0: i32) -> (i32, i32) {
    %c0_i32 = arith.constant 0 : i32
    %c0_i32_0 = arith.constant 0 : i32
    %c0_i32_1 = arith.constant 0 : i32
    return %c0_i32, %c0_i32_0 : i32, i32
  }
  func.func @transform_3(%arg0: i32) -> (i32, i32) {
    %c0_i32 = arith.constant 0 : i32
    %c0_i32_0 = arith.constant 0 : i32
    %c0_i32_1 = arith.constant 0 : i32
    return %c0_i32, %c0_i32_0 : i32, i32
  }
  func.func @transform_4(%arg0: i32) -> (i32, i32) {
    %c0_i32 = arith.constant 0 : i32
    %c0_i32_0 = arith.constant 0 : i32
    %c0_i32_1 = arith.constant 0 : i32
    return %c0_i32, %c0_i32_0 : i32, i32
  }
  func.func @transform_5(%arg0: i32) -> (i32, i32) {
    %c0_i32 = arith.constant 0 : i32
    %c0_i32_0 = arith.constant 0 : i32
    %c0_i32_1 = arith.constant 0 : i32
    return %c0_i32, %c0_i32_0 : i32, i32
  }
  func.func @transform_6(%arg0: i32) -> (i32, i32) {
    %c0_i32 = arith.constant 0 : i32
    %c0_i32_0 = arith.constant 0 : i32
    %c0_i32_1 = arith.constant 0 : i32
    return %c0_i32, %c0_i32_0 : i32, i32
  }
  func.func @transform_7(%arg0: i32) -> (i32, i32) {
    %c0_i32 = arith.constant 0 : i32
    %c0_i32_0 = arith.constant 0 : i32
    %c0_i32_1 = arith.constant 0 : i32
    return %c0_i32, %c0_i32_0 : i32, i32
  }
  func.func @transform_8(%arg0: i32) -> (i32, i32) {
    %c0_i32 = arith.constant 0 : i32
    %c0_i32_0 = arith.constant 0 : i32
    %c0_i32_1 = arith.constant 0 : i32
    return %c0_i32, %c0_i32_0 : i32, i32
  }
  func.func @transform_9(%arg0: i32) -> (i32, i32) {
    %c0_i32 = arith.constant 0 : i32
    %c0_i32_0 = arith.constant 0 : i32
    return %arg0, %c0_i32 : i32, i32
  }
}

</mosaic_0001>

<llo_original>
// kernel: tpu_custom_call.1
$region0: #{tpu_custom_call.1}
  #allocation0 [shape = 'u32[]', space=smem, size = 0x4, offset = 0x4, fixed_abs, tag = 'smem constant byte address 0x4 - core index']
  #allocation1 [shape = 'u32[144,128]{1,0:T(1,128)}', space=vmem, size = 0x12000, scoped, tag = 'internal scratch']
  %s0 = inlined_call_operand.hbm [shape: f32[16,128], index: 0, kind: input, shape index: {}]
  %s1 = inlined_call_operand.hbm [shape: f32[128,512], index: 1, kind: input, shape index: {}]
  %s2 = inlined_call_operand.vmem [shape: f32[1,256], index: 2, kind: input, shape index: {}]
  %s3 = inlined_call_operand.hbm [shape: f32[128,512], index: 3, kind: input, shape index: {}]
  %s4 = inlined_call_operand.vmem [shape: f32[1,256], index: 4, kind: input, shape index: {}]
  %s5 = inlined_call_operand.hbm [shape: f32[128,512], index: 5, kind: input, shape index: {}]
  %s6 = inlined_call_operand.vmem [shape: f32[1,256], index: 6, kind: input, shape index: {}]
  %s7 = inlined_call_operand.hbm [shape: f32[128,256], index: 7, kind: input, shape index: {}]
  %s8 = inlined_call_operand.vmem [shape: f32[1,256], index: 8, kind: input, shape index: {}]
  %s9 = inlined_call_operand.hbm [shape: f32[16,128], index: 9, kind: output, shape index: {}]
  %s10 = sld [smem:[#allocation0]]
  $region89: #{tpu_custom_call.1} parent=0
    _
  %s12 = ssub.s32 1, %s10
  %s13 = scalar_select 0, %s12, %s10
  $region1: #{tpu_custom_call.1} parent=0
    #allocation2 [shape = 'u8[8192]{0}', space=vmem, size = 0x2000, scoped, tag = 'input window, operand 0']
    #allocation3 [shape = 's32[2]{0}', space=sflag, size = 0x8, scoped, tag = 'scoped memory for tpu_custom_call.1']
    #allocation4 [shape = 's32[2]{0}', space=sflag, size = 0x8, scoped, tag = 'scoped memory for tpu_custom_call.1']
    #allocation5 [shape = 'u8[262144]{0}', space=vmem, size = 0x40000, scoped, tag = 'input window, operand 1, single buffered']
    #allocation6 [shape = 's32[1]{0}', space=sflag, size = 0x4, scoped, tag = 'scoped memory for tpu_custom_call.1']
    #allocation7 [shape = 'u8[262144]{0}', space=vmem, size = 0x40000, scoped, tag = 'input window, operand 3, single buffered']
    #allocation8 [shape = 'u8[262144]{0}', space=vmem, size = 0x40000, scoped, tag = 'input window, operand 5, single buffered']
    #allocation9 [shape = 's32[1]{0}', space=sflag, size = 0x4, scoped, tag = 'scoped memory for tpu_custom_call.1']
    #allocation10 [shape = 'u8[131072]{0}', space=vmem, size = 0x20000, scoped, tag = 'input window, operand 7, single buffered']
    #allocation11 [shape = 'u8[8192]{0}', space=vmem, size = 0x2000, scoped, tag = 'output window, operand 0']
    %14 = vsyncpa [#allocation3], 0
    %s15 = scalar_lea.sflag [#allocation3], 1
    %16 = vsyncpa %s15, 0
    %17 = vsyncpa [#allocation6], 0
    %18 = vsyncpa [#allocation9], 0
    %19 = vsyncpa [#allocation4], 0
    %s20 = scalar_lea.sflag [#allocation4], 1
    %21 = vsyncpa %s20, 0
    loop: start=0, step=1, limit=4
    $region2: #{tpu_custom_call.1} parent=1 // loop_pre_header
      _
    $region3: #{tpu_custom_call.1} parent=1 // loop_header
      %s23 = sphi 0, %s27
      %p24 = scmp.ge.s32.totalorder %s23, 4
      %s33 = sphi 0, %s35
      %s36 = sphi 0, %s33
      %s37 = sphi 0, %s36
      %s53 = sphi 0, %s37
      %s57 = sphi 0, %s57
      %s59 = sphi 0, %s57
      %s60 = sphi 0, %s59
      %s74 = sphi 0, %s60
      %s78 = sphi 0, %s78
      %s80 = sphi 0, %s78
      %s81 = sphi 0, %s80
      %s95 = sphi 0, %s81
      %s99 = sphi 0, %s99
      %s101 = sphi 0, %s99
      %s102 = sphi 0, %s101
      %s116 = sphi 0, %s102
      %s120 = sphi 0, %s120
      %s122 = sphi 0, %s120
      %s123 = sphi 0, %s122
      %s137 = sphi 0, %s123
      %s141 = sphi 0, %s141
      %s143 = sphi 0, %s141
      %s144 = sphi 0, %s143
      %s158 = sphi 0, %s144
      %s162 = sphi 0, %s162
      %s164 = sphi 0, %s162
      %s165 = sphi 0, %s164
      %s179 = sphi 0, %s165
      %s183 = sphi 0, %s183
      %s185 = sphi 0, %s183
      %s186 = sphi 0, %s185
      %s200 = sphi 0, %s186
      %s204 = sphi 0, %s204
      %s206 = sphi 0, %s204
      %s207 = sphi 0, %s206
      %s221 = sphi 0, %s207
      %s227 = sphi 0, %s229
      %s230 = sphi 0, %s227
      %s231 = sphi 0, %s230
      %s247 = sphi 0, %s231
    $region4: #{tpu_custom_call.1} parent=1 // loop_header_branch
      %26 = sbr.rel (%p24) target = $region8
    $region5: #{tpu_custom_call.1} parent=1 // loop_body
      %s28 = ssub.s32 %s23, 1
      %s29 = ssub.s32 %s23, 2
      %s30 = sadd.s32 %s23, 1
      %s31 = ssub.s32 %s23, %s30
      %p32 = scmp.eq.s32.totalorder %s31, 0
      %s34 = sadd.s32 %s33, 1
      %s35 = scalar_select %p32, %s33, %s34
      %p38 = pneg %p32
      %p39 = scmp.eq.s32.totalorder %s23, 1
      %p40 = por %p38, %p39
      %p41 = scmp.ne.s32.totalorder %s33, %s36
      %p42 = scmp.eq.s32.totalorder %s23, 0
      %p43 = por %p41, %p42
      %p44 = scmp.ne.s32.totalorder %s33, %s36
      %p45 = scmp.eq.s32.totalorder %s28, 1
      %p46 = por %p44, %p45
      %p47 = scmp.ne.s32.totalorder %s36, %s37
      %p48 = scmp.eq.s32.totalorder %s28, 0
      %p49 = por %p47, %p48
      %p50 = scmp.ne.s32.totalorder %s36, %s37
      %p51 = scmp.eq.s32.totalorder %s29, 1
      %p52 = por %p50, %p51
      %p54 = scmp.ne.s32.totalorder %s37, %s53
      %p55 = scmp.eq.s32.totalorder %s29, 0
      %p56 = por %p54, %p55
      %s58 = sadd.s32 %s57, 1
      %p61 = scmp.eq.s32.totalorder %s23, 1
      %p62 = scmp.ne.s32.totalorder %s57, %s59
      %p63 = scmp.eq.s32.totalorder %s23, 0
      %p64 = por %p62, %p63
      %p65 = scmp.ne.s32.totalorder %s57, %s59
      %p66 = scmp.eq.s32.totalorder %s28, 1
      %p67 = por %p65, %p66
      %p68 = scmp.ne.s32.totalorder %s59, %s60
      %p69 = scmp.eq.s32.totalorder %s28, 0
      %p70 = por %p68, %p69
      %p71 = scmp.ne.s32.totalorder %s59, %s60
      %p72 = scmp.eq.s32.totalorder %s29, 1
      %p73 = por %p71, %p72
      %p75 = scmp.ne.s32.totalorder %s60, %s74
      %p76 = scmp.eq.s32.totalorder %s29, 0
      %p77 = por %p75, %p76
      %s79 = sadd.s32 %s78, 1
      %p82 = scmp.eq.s32.totalorder %s23, 1
      %p83 = scmp.ne.s32.totalorder %s78, %s80
      %p84 = scmp.eq.s32.totalorder %s23, 0
      %p85 = por %p83, %p84
      %p86 = scmp.ne.s32.totalorder %s78, %s80
      %p87 = scmp.eq.s32.totalorder %s28, 1
      %p88 = por %p86, %p87
      %p89 = scmp.ne.s32.totalorder %s80, %s81
      %p90 = scmp.eq.s32.totalorder %s28, 0
      %p91 = por %p89, %p90
      %p92 = scmp.ne.s32.totalorder %s80, %s81
      %p93 = scmp.eq.s32.totalorder %s29, 1
      %p94 = por %p92, %p93
      %p96 = scmp.ne.s32.totalorder %s81, %s95
      %p97 = scmp.eq.s32.totalorder %s29, 0
      %p98 = por %p96, %p97
      %s100 = sadd.s32 %s99, 1
      %p103 = scmp.eq.s32.totalorder %s23, 1
      %p104 = scmp.ne.s32.totalorder %s99, %s101
      %p105 = scmp.eq.s32.totalorder %s23, 0
      %p106 = por %p104, %p105
      %p107 = scmp.ne.s32.totalorder %s99, %s101
      %p108 = scmp.eq.s32.totalorder %s28, 1
      %p109 = por %p107, %p108
      %p110 = scmp.ne.s32.totalorder %s101, %s102
      %p111 = scmp.eq.s32.totalorder %s28, 0
      %p112 = por %p110, %p111
      %p113 = scmp.ne.s32.totalorder %s101, %s102
      %p114 = scmp.eq.s32.totalorder %s29, 1
      %p115 = por %p113, %p114
      %p117 = scmp.ne.s32.totalorder %s102, %s116
      %p118 = scmp.eq.s32.totalorder %s29, 0
      %p119 = por %p117, %p118
      %s121 = sadd.s32 %s120, 1
      %p124 = scmp.eq.s32.totalorder %s23, 1
      %p125 = scmp.ne.s32.totalorder %s120, %s122
      %p126 = scmp.eq.s32.totalorder %s23, 0
      %p127 = por %p125, %p126
      %p128 = scmp.ne.s32.totalorder %s120, %s122
      %p129 = scmp.eq.s32.totalorder %s28, 1
      %p130 = por %p128, %p129
      %p131 = scmp.ne.s32.totalorder %s122, %s123
      %p132 = scmp.eq.s32.totalorder %s28, 0
      %p133 = por %p131, %p132
      %p134 = scmp.ne.s32.totalorder %s122, %s123
      %p135 = scmp.eq.s32.totalorder %s29, 1
      %p136 = por %p134, %p135
      %p138 = scmp.ne.s32.totalorder %s123, %s137
      %p139 = scmp.eq.s32.totalorder %s29, 0
      %p140 = por %p138, %p139
      %s142 = sadd.s32 %s141, 1
      %p145 = scmp.eq.s32.totalorder %s23, 1
      %p146 = scmp.ne.s32.totalorder %s141, %s143
      %p147 = scmp.eq.s32.totalorder %s23, 0
      %p148 = por %p146, %p147
      %p149 = scmp.ne.s32.totalorder %s141, %s143
      %p150 = scmp.eq.s32.totalorder %s28, 1
      %p151 = por %p149, %p150
      %p152 = scmp.ne.s32.totalorder %s143, %s144
      %p153 = scmp.eq.s32.totalorder %s28, 0
      %p154 = por %p152, %p153
      %p155 = scmp.ne.s32.totalorder %s143, %s144
      %p156 = scmp.eq.s32.totalorder %s29, 1
      %p157 = por %p155, %p156
      %p159 = scmp.ne.s32.totalorder %s144, %s158
      %p160 = scmp.eq.s32.totalorder %s29, 0
      %p161 = por %p159, %p160
      %s163 = sadd.s32 %s162, 1
      %p166 = scmp.eq.s32.totalorder %s23, 1
      %p167 = scmp.ne.s32.totalorder %s162, %s164
      %p168 = scmp.eq.s32.totalorder %s23, 0
      %p169 = por %p167, %p168
      %p170 = scmp.ne.s32.totalorder %s162, %s164
      %p171 = scmp.eq.s32.totalorder %s28, 1
      %p172 = por %p170, %p171
      %p173 = scmp.ne.s32.totalorder %s164, %s165
      %p174 = scmp.eq.s32.totalorder %s28, 0
      %p175 = por %p173, %p174
      %p176 = scmp.ne.s32.totalorder %s164, %s165
      %p177 = scmp.eq.s32.totalorder %s29, 1
      %p178 = por %p176, %p177
      %p180 = scmp.ne.s32.totalorder %s165, %s179
      %p181 = scmp.eq.s32.totalorder %s29, 0
      %p182 = por %p180, %p181
      %s184 = sadd.s32 %s183, 1
      %p187 = scmp.eq.s32.totalorder %s23, 1
      %p188 = scmp.ne.s32.totalorder %s183, %s185
      %p189 = scmp.eq.s32.totalorder %s23, 0
      %p190 = por %p188, %p189
      %p191 = scmp.ne.s32.totalorder %s183, %s185
      %p192 = scmp.eq.s32.totalorder %s28, 1
      %p193 = por %p191, %p192
      %p194 = scmp.ne.s32.totalorder %s185, %s186
      %p195 = scmp.eq.s32.totalorder %s28, 0
      %p196 = por %p194, %p195
      %p197 = scmp.ne.s32.totalorder %s185, %s186
      %p198 = scmp.eq.s32.totalorder %s29, 1
      %p199 = por %p197, %p198
      %p201 = scmp.ne.s32.totalorder %s186, %s200
      %p202 = scmp.eq.s32.totalorder %s29, 0
      %p203 = por %p201, %p202
      %s205 = sadd.s32 %s204, 1
      %p208 = scmp.eq.s32.totalorder %s23, 1
      %p209 = scmp.ne.s32.totalorder %s204, %s206
      %p210 = scmp.eq.s32.totalorder %s23, 0
      %p211 = por %p209, %p210
      %p212 = scmp.ne.s32.totalorder %s204, %s206
      %p213 = scmp.eq.s32.totalorder %s28, 1
      %p214 = por %p212, %p213
      %p215 = scmp.ne.s32.totalorder %s206, %s207
      %p216 = scmp.eq.s32.totalorder %s28, 0
      %p217 = por %p215, %p216
      %p218 = scmp.ne.s32.totalorder %s206, %s207
      %p219 = scmp.eq.s32.totalorder %s29, 1
      %p220 = por %p218, %p219
      %p222 = scmp.ne.s32.totalorder %s207, %s221
      %p223 = scmp.eq.s32.totalorder %s29, 0
      %p224 = por %p222, %p223
      %s225 = ssub.s32 %s23, %s30
      %p226 = scmp.eq.s32.totalorder %s225, 0
      %s228 = sadd.s32 %s227, 1
      %s229 = scalar_select %p226, %s227, %s228
      %p232 = pneg %p226
      %p233 = scmp.eq.s32.totalorder %s23, 1
      %p234 = por %p232, %p233
      %p235 = scmp.ne.s32.totalorder %s227, %s230
      %p236 = scmp.eq.s32.totalorder %s23, 0
      %p237 = por %p235, %p236
      %p238 = scmp.ne.s32.totalorder %s227, %s230
      %p239 = scmp.eq.s32.totalorder %s28, 1
      %p240 = por %p238, %p239
      %p241 = scmp.ne.s32.totalorder %s230, %s231
      %p242 = scmp.eq.s32.totalorder %s28, 0
      %p243 = por %p241, %p242
      %p244 = scmp.ne.s32.totalorder %s230, %s231
      %p245 = scmp.eq.s32.totalorder %s29, 1
      %p246 = por %p244, %p245
      %p248 = scmp.ne.s32.totalorder %s231, %s247
      %p249 = scmp.eq.s32.totalorder %s29, 0
      %p250 = por %p248, %p249
      %p251 = scmp.le.s32.totalorder 1, %s23
      %p252 = scmp.lt.s32.totalorder %s23, 3
      %p253 = pnand %p251, %p252
      %p254 = pneg %p253
      // Predicated region
      $region9: #{tpu_custom_call.1} parent=5 // pred_check
        _
      $region10: #{tpu_custom_call.1} parent=5 // pred_check_branch
        %256 = sbr.rel (%p253) target = $region12
      $region11: #{tpu_custom_call.1} parent=5 // pred_region
        %s257 = ssub.s32 %s23, 1
        // Predicated region
        $region13: #{tpu_custom_call.1} parent=11 // pred_check
          %p258 = pneg %p70
        $region14: #{tpu_custom_call.1} parent=11 // pred_check_branch
          %260 = sbr.rel (%p258) target = $region16
        $region15: #{tpu_custom_call.1} parent=11 // pred_region
          %s262 = ssub.s32 8192, 8192
          %263 = vsyncadd [#allocation6], %s262
          %s264 = sshll.u32 [#allocation5], 4
          %s265 = int_to_ptr.vmem [resolvable:$true] %s264
          %270 = dma.hbm_to_vmem [thread:$0]  %s1, 8192, %s265, [#allocation6], 512, 512, 32
        $region16: #{tpu_custom_call.1} parent=11 // pred_fallthru
          _
        // Predicated region
        $region17: #{tpu_custom_call.1} parent=11 // pred_check
          %p271 = pneg %p91
        $region18: #{tpu_custom_call.1} parent=11 // pred_check_branch
          %273 = sbr.rel (%p271) target = $region20
        $region19: #{tpu_custom_call.1} parent=11 // pred_region
          _
        $region20: #{tpu_custom_call.1} parent=11 // pred_fallthru
          _
        // Predicated region
        $region21: #{tpu_custom_call.1} parent=11 // pred_check
          %p274 = pneg %p112
        $region22: #{tpu_custom_call.1} parent=11 // pred_check_branch
          %276 = sbr.rel (%p274) target = $region24
        $region23: #{tpu_custom_call.1} parent=11 // pred_region
          %s278 = ssub.s32 8192, 8192
          %279 = vsyncadd [#allocation6], %s278
          %s280 = sshll.u32 [#allocation7], 4
          %s281 = int_to_ptr.vmem [resolvable:$true] %s280
          %286 = dma.hbm_to_vmem [thread:$0]  %s3, 8192, %s281, [#allocation6], 512, 512, 32
        $region24: #{tpu_custom_call.1} parent=11 // pred_fallthru
          _
        // Predicated region
        $region25: #{tpu_custom_call.1} parent=11 // pred_check
          %p287 = pneg %p133
        $region26: #{tpu_custom_call.1} parent=11 // pred_check_branch
          %289 = sbr.rel (%p287) target = $region28
        $region27: #{tpu_custom_call.1} parent=11 // pred_region
          _
        $region28: #{tpu_custom_call.1} parent=11 // pred_fallthru
          _
        // Predicated region
        $region29: #{tpu_custom_call.1} parent=11 // pred_check
          %p290 = pneg %p154
        $region30: #{tpu_custom_call.1} parent=11 // pred_check_branch
          %292 = sbr.rel (%p290) target = $region32
        $region31: #{tpu_custom_call.1} parent=11 // pred_region
          %s294 = ssub.s32 8192, 8192
          %295 = vsyncadd [#allocation9], %s294
          %s296 = sshll.u32 [#allocation8], 4
          %s297 = int_to_ptr.vmem [resolvable:$true] %s296
          %302 = dma.hbm_to_vmem [thread:$0]  %s5, 8192, %s297, [#allocation9], 512, 512, 32
        $region32: #{tpu_custom_call.1} parent=11 // pred_fallthru
          _
        // Predicated region
        $region33: #{tpu_custom_call.1} parent=11 // pred_check
          %p303 = pneg %p175
        $region34: #{tpu_custom_call.1} parent=11 // pred_check_branch
          %305 = sbr.rel (%p303) target = $region36
        $region35: #{tpu_custom_call.1} parent=11 // pred_region
          _
        $region36: #{tpu_custom_call.1} parent=11 // pred_fallthru
          _
        // Predicated region
        $region37: #{tpu_custom_call.1} parent=11 // pred_check
          %p306 = pneg %p196
        $region38: #{tpu_custom_call.1} parent=11 // pred_check_branch
          %308 = sbr.rel (%p306) target = $region40
        $region39: #{tpu_custom_call.1} parent=11 // pred_region
          %s310 = ssub.s32 4096, 4096
          %311 = vsyncadd [#allocation9], %s310
          %s312 = sshll.u32 [#allocation10], 4
          %s313 = int_to_ptr.vmem [resolvable:$true] %s312
          %318 = dma.hbm_to_vmem [thread:$0]  %s7, 4096, %s313, [#allocation9], 256, 256, 16
        $region40: #{tpu_custom_call.1} parent=11 // pred_fallthru
          _
        // Predicated region
        $region41: #{tpu_custom_call.1} parent=11 // pred_check
          %p319 = pneg %p217
        $region42: #{tpu_custom_call.1} parent=11 // pred_check_branch
          %321 = sbr.rel (%p319) target = $region44
        $region43: #{tpu_custom_call.1} parent=11 // pred_region
          _
        $region44: #{tpu_custom_call.1} parent=11 // pred_fallthru
          _
      $region12: #{tpu_custom_call.1} parent=5 // pred_fallthru
        _
      %p322 = scmp.lt.s32.totalorder %s23, 2
      // Predicated region
      $region45: #{tpu_custom_call.1} parent=5 // pred_check
        %p323 = pneg %p322
      $region46: #{tpu_custom_call.1} parent=5 // pred_check_branch
        %325 = sbr.rel (%p323) target = $region48
      $region47: #{tpu_custom_call.1} parent=5 // pred_region
        // Predicated region
        $region49: #{tpu_custom_call.1} parent=47 // pred_check
          %p326 = pneg %p43
        $region50: #{tpu_custom_call.1} parent=47 // pred_check_branch
          %328 = sbr.rel (%p326) target = $region52
        $region51: #{tpu_custom_call.1} parent=47 // pred_region
          %s329 = sand.u32 %s33, 1
          %s330 = scalar_lea.sflag [#allocation3], %s329
          %s331 = sand.u32 %s33, 1
          %s332 = smul.addr %s331, 8
          %s333 = scalar_lea.vmem [#allocation2], %s332
          %s335 = ssub.s32 128, 128
          %336 = vsyncadd %s330, %s335
          %s337 = smul.addr %s23, 128
          %s338 = scalar_lea.hbm %s0, %s337
          %s340 = sshll.u32 %s333, 4
          %s341 = int_to_ptr.vmem [resolvable:$true] %s340
          %343 = dma.hbm_to_vmem [thread:$0]  %s338, 128, %s341, %s330
        $region52: #{tpu_custom_call.1} parent=47 // pred_fallthru
          _
      $region48: #{tpu_custom_call.1} parent=5 // pred_fallthru
        _
      %p344 = scmp.le.s32.totalorder 1, %s23
      %p345 = scmp.lt.s32.totalorder %s23, 3
      %p346 = pnand %p344, %p345
      %p347 = pneg %p346
      // Predicated region
      $region53: #{tpu_custom_call.1} parent=5 // pred_check
        _
      $region54: #{tpu_custom_call.1} parent=5 // pred_check_branch
        %349 = sbr.rel (%p346) target = $region56
      $region55: #{tpu_custom_call.1} parent=5 // pred_region
        %s350 = ssub.s32 %s23, 1
        %s351 = sand.u32 %s36, 1
        %s352 = scalar_lea.sflag [#allocation3], %s351
        %s353 = sand.u32 %s36, 1
        %s354 = smul.addr %s353, 8
        %s355 = scalar_lea.vmem [#allocation2], %s354
        // Predicated region
        $region57: #{tpu_custom_call.1} parent=55 // pred_check
          %p356 = pneg %p49
        $region58: #{tpu_custom_call.1} parent=55 // pred_check_branch
          %358 = sbr.rel (%p356) target = $region60
        $region59: #{tpu_custom_call.1} parent=55 // pred_region
          %359 = dma.done %s352, 128
        $region60: #{tpu_custom_call.1} parent=55 // pred_fallthru
          _
        // Predicated region
        $region61: #{tpu_custom_call.1} parent=55 // pred_check
          %p360 = pneg %p70
        $region62: #{tpu_custom_call.1} parent=55 // pred_check_branch
          %362 = sbr.rel (%p360) target = $region64
        $region63: #{tpu_custom_call.1} parent=55 // pred_region
          %363 = dma.done [#allocation6], 8192
        $region64: #{tpu_custom_call.1} parent=55 // pred_fallthru
          _
        // Predicated region
        $region65: #{tpu_custom_call.1} parent=55 // pred_check
          %p364 = pneg %p112
        $region66: #{tpu_custom_call.1} parent=55 // pred_check_branch
          %366 = sbr.rel (%p364) target = $region68
        $region67: #{tpu_custom_call.1} parent=55 // pred_region
          %367 = dma.done [#allocation6], 8192
        $region68: #{tpu_custom_call.1} parent=55 // pred_fallthru
          _
        // Predicated region
        $region69: #{tpu_custom_call.1} parent=55 // pred_check
          %p368 = pneg %p154
        $region70: #{tpu_custom_call.1} parent=55 // pred_check_branch
          %370 = sbr.rel (%p368) target = $region72
        $region71: #{tpu_custom_call.1} parent=55 // pred_region
          %371 = dma.done [#allocation9], 8192
        $region72: #{tpu_custom_call.1} parent=55 // pred_fallthru
          _
        // Predicated region
        $region73: #{tpu_custom_call.1} parent=55 // pred_check
          %p372 = pneg %p196
        $region74: #{tpu_custom_call.1} parent=55 // pred_check_branch
          %374 = sbr.rel (%p372) target = $region76
        $region75: #{tpu_custom_call.1} parent=55 // pred_region
          %375 = dma.done [#allocation9], 4096
        $region76: #{tpu_custom_call.1} parent=55 // pred_fallthru
          _
        %s376 = sand.u32 %s36, 1
        %s377 = scalar_lea.sflag [#allocation3], %s376
        %s378 = sand.u32 %s36, 1
        %s379 = smul.addr %s378, 8
        %s380 = scalar_lea.vmem [#allocation2], %s379
        %p381 = pneg %p49
        %p382 = pneg %p46
        %p383 = pneg %p70
        %p384 = pneg %p67
        %p385 = pneg %p91
        %p386 = pneg %p88
        %p387 = pneg %p112
        %p388 = pneg %p109
        %p389 = pneg %p133
        %p390 = pneg %p130
        %p391 = pneg %p154
        %p392 = pneg %p151
        %p393 = pneg %p175
        %p394 = pneg %p172
        %p395 = pneg %p196
        %p396 = pneg %p193
        %p397 = pneg %p217
        %p398 = pneg %p214
        %p399 = pneg %p243
        %p400 = pneg %p240
        %s401 = sand.u32 %s230, 1
        %s402 = scalar_lea.sflag [#allocation4], %s401
        %s403 = sand.u32 %s230, 1
        %s404 = smul.addr %s403, 8
        %s405 = scalar_lea.vmem [#allocation11], %s404
        %v406 = vld [vmem:[%s355] sm:$0xff]
        %407 = vst [vmem:[%s405] sm:$0xff] %v406
        %v408 = vlaneseq
        %v409 = vshrl.u32 %v408, 7
        %vm410 = vcmp.lt.s32.totalorder %v409, 0
        %v411 = vsub.s32 0, %v409
        %v412 = vsel %vm410, %v411, %v409
        %v413 = vshrl.u32 %v412, 3
        %v414 = vand.u32 %v412, 7
        %v415 = vsub.s32 0, %v414
        %v416 = vsel %vm410, %v415, %v414
        %vm417 = vcmp.ne.s32.totalorder %v416, 0
        %vm418 = vcmp.lt.s32.totalorder %v416, 0
        %vm419 = vmand %vm418, %vm417
        %v420 = vadd.s32 %v416, 8
        %v421 = vsel %vm419, %v420, %v416
        %v422 = vld [vmem:[#allocation5] sm:$0xff]
        %v423 = vld [vmem:[#allocation5 + $0x8] sm:$0xff]
        %v424 = vld [vmem:[#allocation5 + $0x10] sm:$0xff]
        %v425 = vld [vmem:[#allocation5 + $0x18] sm:$0xff]
        %v426 = vld [vmem:[#allocation5 + $0x20] sm:$0xff]
        %v427 = vld [vmem:[#allocation5 + $0x28] sm:$0xff]
        %v428 = vld [vmem:[#allocation5 + $0x30] sm:$0xff]
        %v429 = vld [vmem:[#allocation5 + $0x38] sm:$0xff]
        %v430 = vld [vmem:[#allocation5 + $0x40] sm:$0xff]
        %v431 = vld [vmem:[#allocation5 + $0x48] sm:$0xff]
        %v432 = vld [vmem:[#allocation5 + $0x50] sm:$0xff]
        %v433 = vld [vmem:[#allocation5 + $0x58] sm:$0xff]
        %v434 = vld [vmem:[#allocation5 + $0x60] sm:$0xff]
        %v435 = vld [vmem:[#allocation5 + $0x68] sm:$0xff]
        %v436 = vld [vmem:[#allocation5 + $0x70] sm:$0xff]
        %v437 = vld [vmem:[#allocation5 + $0x78] sm:$0xff]
        %v438 = vld [vmem:[#allocation5 + $0x80] sm:$0xff]
        %v439 = vld [vmem:[#allocation5 + $0x88] sm:$0xff]
        %v440 = vld [vmem:[#allocation5 + $0x90] sm:$0xff]
        %v441 = vld [vmem:[#allocation5 + $0x98] sm:$0xff]
        %v442 = vld [vmem:[#allocation5 + $0xa0] sm:$0xff]
        %v443 = vld [vmem:[#allocation5 + $0xa8] sm:$0xff]
        %v444 = vld [vmem:[#allocation5 + $0xb0] sm:$0xff]
        %v445 = vld [vmem:[#allocation5 + $0xb8] sm:$0xff]
        %v446 = vld [vmem:[#allocation5 + $0xc0] sm:$0xff]
        %v447 = vld [vmem:[#allocation5 + $0xc8] sm:$0xff]
        %v448 = vld [vmem:[#allocation5 + $0xd0] sm:$0xff]
        %v449 = vld [vmem:[#allocation5 + $0xd8] sm:$0xff]
        %v450 = vld [vmem:[#allocation5 + $0xe0] sm:$0xff]
        %v451 = vld [vmem:[#allocation5 + $0xe8] sm:$0xff]
        %v452 = vld [vmem:[#allocation5 + $0xf0] sm:$0xff]
        %v453 = vld [vmem:[#allocation5 + $0xf8] sm:$0xff]
        %v454 = vld [vmem:[#allocation5 + $0x100] sm:$0xff]
        %v455 = vld [vmem:[#allocation5 + $0x108] sm:$0xff]
        %v456 = vld [vmem:[#allocation5 + $0x110] sm:$0xff]
        %v457 = vld [vmem:[#allocation5 + $0x118] sm:$0xff]
        %v458 = vld [vmem:[#allocation5 + $0x120] sm:$0xff]
        %v459 = vld [vmem:[#allocation5 + $0x128] sm:$0xff]
        %v460 = vld [vmem:[#allocation5 + $0x130] sm:$0xff]
        %v461 = vld [vmem:[#allocation5 + $0x138] sm:$0xff]
        %v462 = vld [vmem:[#allocation5 + $0x140] sm:$0xff]
        %v463 = vld [vmem:[#allocation5 + $0x148] sm:$0xff]
        %v464 = vld [vmem:[#allocation5 + $0x150] sm:$0xff]
        %v465 = vld [vmem:[#allocation5 + $0x158] sm:$0xff]
        %v466 = vld [vmem:[#allocation5 + $0x160] sm:$0xff]
        %v467 = vld [vmem:[#allocation5 + $0x168] sm:$0xff]
        %v468 = vld [vmem:[#allocation5 + $0x170] sm:$0xff]
        %v469 = vld [vmem:[#allocation5 + $0x178] sm:$0xff]
        %v470 = vld [vmem:[#allocation5 + $0x180] sm:$0xff]
        %v471 = vld [vmem:[#allocation5 + $0x188] sm:$0xff]
        %v472 = vld [vmem:[#allocation5 + $0x190] sm:$0xff]
        %v473 = vld [vmem:[#allocation5 + $0x198] sm:$0xff]
        %v474 = vld [vmem:[#allocation5 + $0x1a0] sm:$0xff]
        %v475 = vld [vmem:[#allocation5 + $0x1a8] sm:$0xff]
        %v476 = vld [vmem:[#allocation5 + $0x1b0] sm:$0xff]
        %v477 = vld [vmem:[#allocation5 + $0x1b8] sm:$0xff]
        %v478 = vld [vmem:[#allocation5 + $0x1c0] sm:$0xff]
        %v479 = vld [vmem:[#allocation5 + $0x1c8] sm:$0xff]
        %v480 = vld [vmem:[#allocation5 + $0x1d0] sm:$0xff]
        %v481 = vld [vmem:[#allocation5 + $0x1d8] sm:$0xff]
        %v482 = vld [vmem:[#allocation5 + $0x1e0] sm:$0xff]
        %v483 = vld [vmem:[#allocation5 + $0x1e8] sm:$0xff]
        %v484 = vld [vmem:[#allocation5 + $0x1f0] sm:$0xff]
        %v485 = vld [vmem:[#allocation5 + $0x1f8] sm:$0xff]
        %v486 = vld [vmem:[%s2] sm:$0x3]
        %v487 = vld [vmem:[%s405] sm:$0xff]
        %488 = vmatprep.subr.mxu0 %v423
        %489 = vmatpush1.msra.mxu0 %v422
        %490 = vmatprep.subr.mxu0 %v427
        %491 = vmatpush1.msra.mxu0 %v426
        %492 = vmatprep.subr.mxu0 %v431
        %493 = vmatpush1.msra.mxu0 %v430
        %494 = vmatprep.subr.mxu0 %v435
        %495 = vmatpush1.msra.mxu0 %v434
        %496 = vmatprep.subr.mxu0 %v439
        %497 = vmatpush1.msra.mxu0 %v438
        %498 = vmatprep.subr.mxu0 %v443
        %499 = vmatpush1.msra.mxu0 %v442
        %500 = vmatprep.subr.mxu0 %v447
        %501 = vmatpush1.msra.mxu0 %v446
        %502 = vmatprep.subr.mxu0 %v451
        %503 = vmatpush1.msra.mxu0 %v450
        %504 = vmatprep.subr.mxu0 %v455
        %505 = vmatpush1.msra.mxu0 %v454
        %506 = vmatprep.subr.mxu0 %v459
        %507 = vmatpush1.msra.mxu0 %v458
        %508 = vmatprep.subr.mxu0 %v463
        %509 = vmatpush1.msra.mxu0 %v462
        %510 = vmatprep.subr.mxu0 %v467
        %511 = vmatpush1.msra.mxu0 %v466
        %512 = vmatprep.subr.mxu0 %v471
        %513 = vmatpush1.msra.mxu0 %v470
        %514 = vmatprep.subr.mxu0 %v475
        %515 = vmatpush1.msra.mxu0 %v474
        %516 = vmatprep.subr.mxu0 %v479
        %517 = vmatpush1.msra.mxu0 %v478
        %518 = vmatprep.subr.mxu0 %v483
        %519 = vmatpush1.msra.mxu0 %v482
        %520 = vmatprep.subr.mxu0 0.0
        %521 = vmatpush1.msra.mxu0 0.0
        %522 = vmatprep.subr.mxu0 0.0
        %523 = vmatpush1.msra.mxu0 0.0
        %524 = vmatprep.subr.mxu0 0.0
        %525 = vmatpush1.msra.mxu0 0.0
        %526 = vmatprep.subr.mxu0 0.0
        %527 = vmatpush1.msra.mxu0 0.0
        %528 = vmatprep.subr.mxu0 0.0
        %529 = vmatpush1.msra.mxu0 0.0
        %530 = vmatprep.subr.mxu0 0.0
        %531 = vmatpush1.msra.mxu0 0.0
        %532 = vmatprep.subr.mxu0 0.0
        %533 = vmatpush1.msra.mxu0 0.0
        %534 = vmatprep.subr.mxu0 0.0
        %535 = vmatpush1.msra.mxu0 0.0
        %536 = vmatprep.subr.mxu0 0.0
        %537 = vmatpush1.msra.mxu0 0.0
        %538 = vmatprep.subr.mxu0 0.0
        %539 = vmatpush1.msra.mxu0 0.0
        %540 = vmatprep.subr.mxu0 0.0
        %541 = vmatpush1.msra.mxu0 0.0
        %542 = vmatprep.subr.mxu0 0.0
        %543 = vmatpush1.msra.mxu0 0.0
        %544 = vmatprep.subr.mxu0 0.0
        %545 = vmatpush1.msra.mxu0 0.0
        %546 = vmatprep.subr.mxu0 0.0
        %547 = vmatpush1.msra.mxu0 0.0
        %548 = vmatprep.subr.mxu0 0.0
        %549 = vmatpush1.msra.mxu0 0.0
        %550 = vmatprep.subr.mxu0 0.0
        %551 = vmatpush1.msra.mxu0 0.0
        %552 = vmatprep.mubr.f32.mxu0 0.0
        %553 = vmatmul.mubr.f32.gmra.mrb[0].mxu0 %v487
        %v554 = vpop.f32.mrb[0].mxu0
        %v555 = vadd.f32 0.0, %v554
        %v556 = vpop.f32.mrb[0].mxu0
        %v557 = vadd.f32 0.0, %v556
        %558 = vdwg.mxu0
        %559 = vmatprep.subr.mxu0 %v425
        %560 = vmatpush1.msra.mxu0 %v424
        %561 = vmatprep.subr.mxu0 %v429
        %562 = vmatpush1.msra.mxu0 %v428
        %563 = vmatprep.subr.mxu0 %v433
        %564 = vmatpush1.msra.mxu0 %v432
        %565 = vmatprep.subr.mxu0 %v437
        %566 = vmatpush1.msra.mxu0 %v436
        %567 = vmatprep.subr.mxu0 %v441
        %568 = vmatpush1.msra.mxu0 %v440
        %569 = vmatprep.subr.mxu0 %v445
        %570 = vmatpush1.msra.mxu0 %v444
        %571 = vmatprep.subr.mxu0 %v449
        %572 = vmatpush1.msra.mxu0 %v448
        %573 = vmatprep.subr.mxu0 %v453
        %574 = vmatpush1.msra.mxu0 %v452
        %575 = vmatprep.subr.mxu0 %v457
        %576 = vmatpush1.msra.mxu0 %v456
        %577 = vmatprep.subr.mxu0 %v461
        %578 = vmatpush1.msra.mxu0 %v460
        %579 = vmatprep.subr.mxu0 %v465
        %580 = vmatpush1.msra.mxu0 %v464
        %581 = vmatprep.subr.mxu0 %v469
        %582 = vmatpush1.msra.mxu0 %v468
        %583 = vmatprep.subr.mxu0 %v473
        %584 = vmatpush1.msra.mxu0 %v472
        %585 = vmatprep.subr.mxu0 %v477
        %586 = vmatpush1.msra.mxu0 %v476
        %587 = vmatprep.subr.mxu0 %v481
        %588 = vmatpush1.msra.mxu0 %v480
        %589 = vmatprep.subr.mxu0 %v485
        %590 = vmatpush1.msra.mxu0 %v484
        %591 = vmatprep.subr.mxu0 0.0
        %592 = vmatpush1.msra.mxu0 0.0
        %593 = vmatprep.subr.mxu0 0.0
        %594 = vmatpush1.msra.mxu0 0.0
        %595 = vmatprep.subr.mxu0 0.0
        %596 = vmatpush1.msra.mxu0 0.0
        %597 = vmatprep.subr.mxu0 0.0
        %598 = vmatpush1.msra.mxu0 0.0
        %599 = vmatprep.subr.mxu0 0.0
        %600 = vmatpush1.msra.mxu0 0.0
        %601 = vmatprep.subr.mxu0 0.0
        %602 = vmatpush1.msra.mxu0 0.0
        %603 = vmatprep.subr.mxu0 0.0
        %604 = vmatpush1.msra.mxu0 0.0
        %605 = vmatprep.subr.mxu0 0.0
        %606 = vmatpush1.msra.mxu0 0.0
        %607 = vmatprep.subr.mxu0 0.0
        %608 = vmatpush1.msra.mxu0 0.0
        %609 = vmatprep.subr.mxu0 0.0
        %610 = vmatpush1.msra.mxu0 0.0
        %611 = vmatprep.subr.mxu0 0.0
        %612 = vmatpush1.msra.mxu0 0.0
        %613 = vmatprep.subr.mxu0 0.0
        %614 = vmatpush1.msra.mxu0 0.0
        %615 = vmatprep.subr.mxu0 0.0
        %616 = vmatpush1.msra.mxu0 0.0
        %617 = vmatprep.subr.mxu0 0.0
        %618 = vmatpush1.msra.mxu0 0.0
        %619 = vmatprep.subr.mxu0 0.0
        %620 = vmatpush1.msra.mxu0 0.0
        %621 = vmatprep.subr.mxu0 0.0
        %622 = vmatpush1.msra.mxu0 0.0
        %623 = vmatprep.mubr.f32.mxu0 0.0
        %624 = vmatmul.mubr.f32.gmra.mrb[0].mxu0 %v487
        %v625 = vpop.f32.mrb[0].mxu0
        %v626 = vadd.f32 0.0, %v625
        %v627 = vpop.f32.mrb[0].mxu0
        %v628 = vadd.f32 0.0, %v627
        %629 = vdwg.mxu0
        %vm630 = vcmp.ge.s32.totalorder %v421, 1
        %v633 = vrot.slane %v555, 7
        %v634 = vrot.slane %v557, 7
        %vm637 = vcmask 1040384
        %v638 = vsel %vm637, %v633, %v633
        %v639 = vsel %vm637, %v634, %v634
        %v640 = vsel %vm630, 1, 0
        %vm641 = vcmp.eq.s32.totalorder %v640, 1
        %v642 = vsel %vm641, %v638, 0.0
        %v643 = vsel %vm641, %v639, 0.0
        %v644 = vadd.f32 %v642, %v626
        %v645 = vadd.f32 %v643, %v628
        %v647 = vlaneseq
        %v648 = vshrl.u32 %v647, 7
        %v649 = vsub.s32 0, %v648
        %v650 = vrot.slane %v486, %v649
        %v651 = vlaneseq
        %v652 = vshrl.u32 %v651, 7
        %v653 = vsub.s32 1, %v652
        %v654 = vrot.slane %v486, %v653
        %v657 = vadd.f32 %v644, %v650
        %v658 = vadd.f32 %v645, %v654
        %v659 = vtanh.pop %v657
        %v660 = vxor.u32 %v658, 2147483648
        %v661 = vmul.f32 %v660, 1.442695
        %v662 = vpow.pop %v661
        %v663 = vadd.f32 %v662, 1.0
        %v664 = vrcp.pop %v663
        %v665 = vmul.f32 1.0, %v664
        %v666 = vmul.f32 %v659, %v665
        %668 = vrot.lane.b32.xlu0 %v666, 8
        %v669 = vpop.permute.xlu0 %668
        %vm671 = vcmask 130112
        %672 = vst.msk [vmem:[%s405] sm:$0xff] %vm671, %v669
        %v673 = vld [vmem:[#allocation7] sm:$0xff]
        %v674 = vld [vmem:[#allocation7 + $0x8] sm:$0xff]
        %v675 = vld [vmem:[#allocation7 + $0x10] sm:$0xff]
        %v676 = vld [vmem:[#allocation7 + $0x18] sm:$0xff]
        %v677 = vld [vmem:[#allocation7 + $0x20] sm:$0xff]
        %v678 = vld [vmem:[#allocation7 + $0x28] sm:$0xff]
        %v679 = vld [vmem:[#allocation7 + $0x30] sm:$0xff]
        %v680 = vld [vmem:[#allocation7 + $0x38] sm:$0xff]
        %v681 = vld [vmem:[#allocation7 + $0x40] sm:$0xff]
        %v682 = vld [vmem:[#allocation7 + $0x48] sm:$0xff]
        %v683 = vld [vmem:[#allocation7 + $0x50] sm:$0xff]
        %v684 = vld [vmem:[#allocation7 + $0x58] sm:$0xff]
        %v685 = vld [vmem:[#allocation7 + $0x60] sm:$0xff]
        %v686 = vld [vmem:[#allocation7 + $0x68] sm:$0xff]
        %v687 = vld [vmem:[#allocation7 + $0x70] sm:$0xff]
        %v688 = vld [vmem:[#allocation7 + $0x78] sm:$0xff]
        %v689 = vld [vmem:[#allocation7 + $0x80] sm:$0xff]
        %v690 = vld [vmem:[#allocation7 + $0x88] sm:$0xff]
        %v691 = vld [vmem:[#allocation7 + $0x90] sm:$0xff]
        %v692 = vld [vmem:[#allocation7 + $0x98] sm:$0xff]
        %v693 = vld [vmem:[#allocation7 + $0xa0] sm:$0xff]
        %v694 = vld [vmem:[#allocation7 + $0xa8] sm:$0xff]
        %v695 = vld [vmem:[#allocation7 + $0xb0] sm:$0xff]
        %v696 = vld [vmem:[#allocation7 + $0xb8] sm:$0xff]
        %v697 = vld [vmem:[#allocation7 + $0xc0] sm:$0xff]
        %v698 = vld [vmem:[#allocation7 + $0xc8] sm:$0xff]
        %v699 = vld [vmem:[#allocation7 + $0xd0] sm:$0xff]
        %v700 = vld [vmem:[#allocation7 + $0xd8] sm:$0xff]
        %v701 = vld [vmem:[#allocation7 + $0xe0] sm:$0xff]
        %v702 = vld [vmem:[#allocation7 + $0xe8] sm:$0xff]
        %v703 = vld [vmem:[#allocation7 + $0xf0] sm:$0xff]
        %v704 = vld [vmem:[#allocation7 + $0xf8] sm:$0xff]
        %v705 = vld [vmem:[#allocation7 + $0x100] sm:$0xff]
        %v706 = vld [vmem:[#allocation7 + $0x108] sm:$0xff]
        %v707 = vld [vmem:[#allocation7 + $0x110] sm:$0xff]
        %v708 = vld [vmem:[#allocation7 + $0x118] sm:$0xff]
        %v709 = vld [vmem:[#allocation7 + $0x120] sm:$0xff]
        %v710 = vld [vmem:[#allocation7 + $0x128] sm:$0xff]
        %v711 = vld [vmem:[#allocation7 + $0x130] sm:$0xff]
        %v712 = vld [vmem:[#allocation7 + $0x138] sm:$0xff]
        %v713 = vld [vmem:[#allocation7 + $0x140] sm:$0xff]
        %v714 = vld [vmem:[#allocation7 + $0x148] sm:$0xff]
        %v715 = vld [vmem:[#allocation7 + $0x150] sm:$0xff]
        %v716 = vld [vmem:[#allocation7 + $0x158] sm:$0xff]
        %v717 = vld [vmem:[#allocation7 + $0x160] sm:$0xff]
        %v718 = vld [vmem:[#allocation7 + $0x168] sm:$0xff]
        %v719 = vld [vmem:[#allocation7 + $0x170] sm:$0xff]
        %v720 = vld [vmem:[#allocation7 + $0x178] sm:$0xff]
        %v721 = vld [vmem:[#allocation7 + $0x180] sm:$0xff]
        %v722 = vld [vmem:[#allocation7 + $0x188] sm:$0xff]
        %v723 = vld [vmem:[#allocation7 + $0x190] sm:$0xff]
        %v724 = vld [vmem:[#allocation7 + $0x198] sm:$0xff]
        %v725 = vld [vmem:[#allocation7 + $0x1a0] sm:$0xff]
        %v726 = vld [vmem:[#allocation7 + $0x1a8] sm:$0xff]
        %v727 = vld [vmem:[#allocation7 + $0x1b0] sm:$0xff]
        %v728 = vld [vmem:[#allocation7 + $0x1b8] sm:$0xff]
        %v729 = vld [vmem:[#allocation7 + $0x1c0] sm:$0xff]
        %v730 = vld [vmem:[#allocation7 + $0x1c8] sm:$0xff]
        %v731 = vld [vmem:[#allocation7 + $0x1d0] sm:$0xff]
        %v732 = vld [vmem:[#allocation7 + $0x1d8] sm:$0xff]
        %v733 = vld [vmem:[#allocation7 + $0x1e0] sm:$0xff]
        %v734 = vld [vmem:[#allocation7 + $0x1e8] sm:$0xff]
        %v735 = vld [vmem:[#allocation7 + $0x1f0] sm:$0xff]
        %v736 = vld [vmem:[#allocation7 + $0x1f8] sm:$0xff]
        %v737 = vld [vmem:[%s4] sm:$0x3]
        %v738 = vld [vmem:[%s405] sm:$0xff]
        %739 = vmatprep.subr.mxu0 %v674
        %740 = vmatpush1.msra.mxu0 %v673
        %741 = vmatprep.subr.mxu0 %v678
        %742 = vmatpush1.msra.mxu0 %v677
        %743 = vmatprep.subr.mxu0 %v682
        %744 = vmatpush1.msra.mxu0 %v681
        %745 = vmatprep.subr.mxu0 %v686
        %746 = vmatpush1.msra.mxu0 %v685
        %747 = vmatprep.subr.mxu0 %v690
        %748 = vmatpush1.msra.mxu0 %v689
        %749 = vmatprep.subr.mxu0 %v694
        %750 = vmatpush1.msra.mxu0 %v693
        %751 = vmatprep.subr.mxu0 %v698
        %752 = vmatpush1.msra.mxu0 %v697
        %753 = vmatprep.subr.mxu0 %v702
        %754 = vmatpush1.msra.mxu0 %v701
        %755 = vmatprep.subr.mxu0 %v706
        %756 = vmatpush1.msra.mxu0 %v705
        %757 = vmatprep.subr.mxu0 %v710
        %758 = vmatpush1.msra.mxu0 %v709
        %759 = vmatprep.subr.mxu0 %v714
        %760 = vmatpush1.msra.mxu0 %v713
        %761 = vmatprep.subr.mxu0 %v718
        %762 = vmatpush1.msra.mxu0 %v717
        %763 = vmatprep.subr.mxu0 %v722
        %764 = vmatpush1.msra.mxu0 %v721
        %765 = vmatprep.subr.mxu0 %v726
        %766 = vmatpush1.msra.mxu0 %v725
        %767 = vmatprep.subr.mxu0 %v730
        %768 = vmatpush1.msra.mxu0 %v729
        %769 = vmatprep.subr.mxu0 %v734
        %770 = vmatpush1.msra.mxu0 %v733
        %771 = vmatprep.subr.mxu0 0.0
        %772 = vmatpush1.msra.mxu0 0.0
        %773 = vmatprep.subr.mxu0 0.0
        %774 = vmatpush1.msra.mxu0 0.0
        %775 = vmatprep.subr.mxu0 0.0
        %776 = vmatpush1.msra.mxu0 0.0
        %777 = vmatprep.subr.mxu0 0.0
        %778 = vmatpush1.msra.mxu0 0.0
        %779 = vmatprep.subr.mxu0 0.0
        %780 = vmatpush1.msra.mxu0 0.0
        %781 = vmatprep.subr.mxu0 0.0
        %782 = vmatpush1.msra.mxu0 0.0
        %783 = vmatprep.subr.mxu0 0.0
        %784 = vmatpush1.msra.mxu0 0.0
        %785 = vmatprep.subr.mxu0 0.0
        %786 = vmatpush1.msra.mxu0 0.0
        %787 = vmatprep.subr.mxu0 0.0
        %788 = vmatpush1.msra.mxu0 0.0
        %789 = vmatprep.subr.mxu0 0.0
        %790 = vmatpush1.msra.mxu0 0.0
        %791 = vmatprep.subr.mxu0 0.0
        %792 = vmatpush1.msra.mxu0 0.0
        %793 = vmatprep.subr.mxu0 0.0
        %794 = vmatpush1.msra.mxu0 0.0
        %795 = vmatprep.subr.mxu0 0.0
        %796 = vmatpush1.msra.mxu0 0.0
        %797 = vmatprep.subr.mxu0 0.0
        %798 = vmatpush1.msra.mxu0 0.0
        %799 = vmatprep.subr.mxu0 0.0
        %800 = vmatpush1.msra.mxu0 0.0
        %801 = vmatprep.subr.mxu0 0.0
        %802 = vmatpush1.msra.mxu0 0.0
        %803 = vmatprep.mubr.f32.mxu0 0.0
        %804 = vmatmul.mubr.f32.gmra.mrb[0].mxu0 %v738
        %v805 = vpop.f32.mrb[0].mxu0
        %v806 = vadd.f32 0.0, %v805
        %v807 = vpop.f32.mrb[0].mxu0
        %v808 = vadd.f32 0.0, %v807
        %809 = vdwg.mxu0
        %810 = vmatprep.subr.mxu0 %v676
        %811 = vmatpush1.msra.mxu0 %v675
        %812 = vmatprep.subr.mxu0 %v680
        %813 = vmatpush1.msra.mxu0 %v679
        %814 = vmatprep.subr.mxu0 %v684
        %815 = vmatpush1.msra.mxu0 %v683
        %816 = vmatprep.subr.mxu0 %v688
        %817 = vmatpush1.msra.mxu0 %v687
        %818 = vmatprep.subr.mxu0 %v692
        %819 = vmatpush1.msra.mxu0 %v691
        %820 = vmatprep.subr.mxu0 %v696
        %821 = vmatpush1.msra.mxu0 %v695
        %822 = vmatprep.subr.mxu0 %v700
        %823 = vmatpush1.msra.mxu0 %v699
        %824 = vmatprep.subr.mxu0 %v704
        %825 = vmatpush1.msra.mxu0 %v703
        %826 = vmatprep.subr.mxu0 %v708
        %827 = vmatpush1.msra.mxu0 %v707
        %828 = vmatprep.subr.mxu0 %v712
        %829 = vmatpush1.msra.mxu0 %v711
        %830 = vmatprep.subr.mxu0 %v716
        %831 = vmatpush1.msra.mxu0 %v715
        %832 = vmatprep.subr.mxu0 %v720
        %833 = vmatpush1.msra.mxu0 %v719
        %834 = vmatprep.subr.mxu0 %v724
        %835 = vmatpush1.msra.mxu0 %v723
        %836 = vmatprep.subr.mxu0 %v728
        %837 = vmatpush1.msra.mxu0 %v727
        %838 = vmatprep.subr.mxu0 %v732
        %839 = vmatpush1.msra.mxu0 %v731
        %840 = vmatprep.subr.mxu0 %v736
        %841 = vmatpush1.msra.mxu0 %v735
        %842 = vmatprep.subr.mxu0 0.0
        %843 = vmatpush1.msra.mxu0 0.0
        %844 = vmatprep.subr.mxu0 0.0
        %845 = vmatpush1.msra.mxu0 0.0
        %846 = vmatprep.subr.mxu0 0.0
        %847 = vmatpush1.msra.mxu0 0.0
        %848 = vmatprep.subr.mxu0 0.0
        %849 = vmatpush1.msra.mxu0 0.0
        %850 = vmatprep.subr.mxu0 0.0
        %851 = vmatpush1.msra.mxu0 0.0
        %852 = vmatprep.subr.mxu0 0.0
        %853 = vmatpush1.msra.mxu0 0.0
        %854 = vmatprep.subr.mxu0 0.0
        %855 = vmatpush1.msra.mxu0 0.0
        %856 = vmatprep.subr.mxu0 0.0
        %857 = vmatpush1.msra.mxu0 0.0
        %858 = vmatprep.subr.mxu0 0.0
        %859 = vmatpush1.msra.mxu0 0.0
        %860 = vmatprep.subr.mxu0 0.0
        %861 = vmatpush1.msra.mxu0 0.0
        %862 = vmatprep.subr.mxu0 0.0
        %863 = vmatpush1.msra.mxu0 0.0
        %864 = vmatprep.subr.mxu0 0.0
        %865 = vmatpush1.msra.mxu0 0.0
        %866 = vmatprep.subr.mxu0 0.0
        %867 = vmatpush1.msra.mxu0 0.0
        %868 = vmatprep.subr.mxu0 0.0
        %869 = vmatpush1.msra.mxu0 0.0
        %870 = vmatprep.subr.mxu0 0.0
        %871 = vmatpush1.msra.mxu0 0.0
        %872 = vmatprep.subr.mxu0 0.0
        %873 = vmatpush1.msra.mxu0 0.0
        %874 = vmatprep.mubr.f32.mxu0 0.0
        %875 = vmatmul.mubr.f32.gmra.mrb[0].mxu0 %v738
        %v876 = vpop.f32.mrb[0].mxu0
        %v877 = vadd.f32 0.0, %v876
        %v878 = vpop.f32.mrb[0].mxu0
        %v879 = vadd.f32 0.0, %v878
        %880 = vdwg.mxu0
        %vm881 = vcmp.ge.s32.totalorder %v421, 2
        %v884 = vrot.slane %v806, 6
        %v885 = vrot.slane %v808, 6
        %vm888 = vcmask 1041408
        %v889 = vsel %vm888, %v884, %v884
        %v890 = vsel %vm888, %v885, %v885
        %v891 = vsel %vm881, 1, 0
        %vm892 = vcmp.eq.s32.totalorder %v891, 1
        %v893 = vsel %vm892, %v889, 0.0
        %v894 = vsel %vm892, %v890, 0.0
        %v895 = vadd.f32 %v893, %v877
        %v896 = vadd.f32 %v894, %v879
        %v898 = vlaneseq
        %v899 = vshrl.u32 %v898, 7
        %v900 = vsub.s32 0, %v899
        %v901 = vrot.slane %v737, %v900
        %v902 = vlaneseq
        %v903 = vshrl.u32 %v902, 7
        %v904 = vsub.s32 1, %v903
        %v905 = vrot.slane %v737, %v904
        %v908 = vadd.f32 %v895, %v901
        %v909 = vadd.f32 %v896, %v905
        %v910 = vtanh.pop %v908
        %v911 = vxor.u32 %v909, 2147483648
        %v912 = vmul.f32 %v911, 1.442695
        %v913 = vpow.pop %v912
        %v914 = vadd.f32 %v913, 1.0
        %v915 = vrcp.pop %v914
        %v916 = vmul.f32 1.0, %v915
        %v917 = vmul.f32 %v910, %v916
        %919 = vrot.lane.b32.xlu0 %v917, 16
        %v920 = vpop.permute.xlu0 %919
        %vm922 = vcmask 195712
        %923 = vst.msk [vmem:[%s405] sm:$0xff] %vm922, %v920
        %v924 = vld [vmem:[#allocation8] sm:$0xff]
        %v925 = vld [vmem:[#allocation8 + $0x8] sm:$0xff]
        %v926 = vld [vmem:[#allocation8 + $0x10] sm:$0xff]
        %v927 = vld [vmem:[#allocation8 + $0x18] sm:$0xff]
        %v928 = vld [vmem:[#allocation8 + $0x20] sm:$0xff]
        %v929 = vld [vmem:[#allocation8 + $0x28] sm:$0xff]
        %v930 = vld [vmem:[#allocation8 + $0x30] sm:$0xff]
        %v931 = vld [vmem:[#allocation8 + $0x38] sm:$0xff]
        %v932 = vld [vmem:[#allocation8 + $0x40] sm:$0xff]
        %v933 = vld [vmem:[#allocation8 + $0x48] sm:$0xff]
        %v934 = vld [vmem:[#allocation8 + $0x50] sm:$0xff]
        %v935 = vld [vmem:[#allocation8 + $0x58] sm:$0xff]
        %v936 = vld [vmem:[#allocation8 + $0x60] sm:$0xff]
        %v937 = vld [vmem:[#allocation8 + $0x68] sm:$0xff]
        %v938 = vld [vmem:[#allocation8 + $0x70] sm:$0xff]
        %v939 = vld [vmem:[#allocation8 + $0x78] sm:$0xff]
        %v940 = vld [vmem:[#allocation8 + $0x80] sm:$0xff]
        %v941 = vld [vmem:[#allocation8 + $0x88] sm:$0xff]
        %v942 = vld [vmem:[#allocation8 + $0x90] sm:$0xff]
        %v943 = vld [vmem:[#allocation8 + $0x98] sm:$0xff]
        %v944 = vld [vmem:[#allocation8 + $0xa0] sm:$0xff]
        %v945 = vld [vmem:[#allocation8 + $0xa8] sm:$0xff]
        %v946 = vld [vmem:[#allocation8 + $0xb0] sm:$0xff]
        %v947 = vld [vmem:[#allocation8 + $0xb8] sm:$0xff]
        %v948 = vld [vmem:[#allocation8 + $0xc0] sm:$0xff]
        %v949 = vld [vmem:[#allocation8 + $0xc8] sm:$0xff]
        %v950 = vld [vmem:[#allocation8 + $0xd0] sm:$0xff]
        %v951 = vld [vmem:[#allocation8 + $0xd8] sm:$0xff]
        %v952 = vld [vmem:[#allocation8 + $0xe0] sm:$0xff]
        %v953 = vld [vmem:[#allocation8 + $0xe8] sm:$0xff]
        %v954 = vld [vmem:[#allocation8 + $0xf0] sm:$0xff]
        %v955 = vld [vmem:[#allocation8 + $0xf8] sm:$0xff]
        %v956 = vld [vmem:[#allocation8 + $0x100] sm:$0xff]
        %v957 = vld [vmem:[#allocation8 + $0x108] sm:$0xff]
        %v958 = vld [vmem:[#allocation8 + $0x110] sm:$0xff]
        %v959 = vld [vmem:[#allocation8 + $0x118] sm:$0xff]
        %v960 = vld [vmem:[#allocation8 + $0x120] sm:$0xff]
        %v961 = vld [vmem:[#allocation8 + $0x128] sm:$0xff]
        %v962 = vld [vmem:[#allocation8 + $0x130] sm:$0xff]
        %v963 = vld [vmem:[#allocation8 + $0x138] sm:$0xff]
        %v964 = vld [vmem:[#allocation8 + $0x140] sm:$0xff]
        %v965 = vld [vmem:[#allocation8 + $0x148] sm:$0xff]
        %v966 = vld [vmem:[#allocation8 + $0x150] sm:$0xff]
        %v967 = vld [vmem:[#allocation8 + $0x158] sm:$0xff]
        %v968 = vld [vmem:[#allocation8 + $0x160] sm:$0xff]
        %v969 = vld [vmem:[#allocation8 + $0x168] sm:$0xff]
        %v970 = vld [vmem:[#allocation8 + $0x170] sm:$0xff]
        %v971 = vld [vmem:[#allocation8 + $0x178] sm:$0xff]
        %v972 = vld [vmem:[#allocation8 + $0x180] sm:$0xff]
        %v973 = vld [vmem:[#allocation8 + $0x188] sm:$0xff]
        %v974 = vld [vmem:[#allocation8 + $0x190] sm:$0xff]
        %v975 = vld [vmem:[#allocation8 + $0x198] sm:$0xff]
        %v976 = vld [vmem:[#allocation8 + $0x1a0] sm:$0xff]
        %v977 = vld [vmem:[#allocation8 + $0x1a8] sm:$0xff]
        %v978 = vld [vmem:[#allocation8 + $0x1b0] sm:$0xff]
        %v979 = vld [vmem:[#allocation8 + $0x1b8] sm:$0xff]
        %v980 = vld [vmem:[#allocation8 + $0x1c0] sm:$0xff]
        %v981 = vld [vmem:[#allocation8 + $0x1c8] sm:$0xff]
        %v982 = vld [vmem:[#allocation8 + $0x1d0] sm:$0xff]
        %v983 = vld [vmem:[#allocation8 + $0x1d8] sm:$0xff]
        %v984 = vld [vmem:[#allocation8 + $0x1e0] sm:$0xff]
        %v985 = vld [vmem:[#allocation8 + $0x1e8] sm:$0xff]
        %v986 = vld [vmem:[#allocation8 + $0x1f0] sm:$0xff]
        %v987 = vld [vmem:[#allocation8 + $0x1f8] sm:$0xff]
        %v988 = vld [vmem:[%s6] sm:$0x3]
        %v989 = vld [vmem:[%s405] sm:$0xff]
        %990 = vmatprep.subr.mxu0 %v925
        %991 = vmatpush1.msra.mxu0 %v924
        %992 = vmatprep.subr.mxu0 %v929
        %993 = vmatpush1.msra.mxu0 %v928
        %994 = vmatprep.subr.mxu0 %v933
        %995 = vmatpush1.msra.mxu0 %v932
        %996 = vmatprep.subr.mxu0 %v937
        %997 = vmatpush1.msra.mxu0 %v936
        %998 = vmatprep.subr.mxu0 %v941
        %999 = vmatpush1.msra.mxu0 %v940
        %1000 = vmatprep.subr.mxu0 %v945
        %1001 = vmatpush1.msra.mxu0 %v944
        %1002 = vmatprep.subr.mxu0 %v949
        %1003 = vmatpush1.msra.mxu0 %v948
        %1004 = vmatprep.subr.mxu0 %v953
        %1005 = vmatpush1.msra.mxu0 %v952
        %1006 = vmatprep.subr.mxu0 %v957
        %1007 = vmatpush1.msra.mxu0 %v956
        %1008 = vmatprep.subr.mxu0 %v961
        %1009 = vmatpush1.msra.mxu0 %v960
        %1010 = vmatprep.subr.mxu0 %v965
        %1011 = vmatpush1.msra.mxu0 %v964
        %1012 = vmatprep.subr.mxu0 %v969
        %1013 = vmatpush1.msra.mxu0 %v968
        %1014 = vmatprep.subr.mxu0 %v973
        %1015 = vmatpush1.msra.mxu0 %v972
        %1016 = vmatprep.subr.mxu0 %v977
        %1017 = vmatpush1.msra.mxu0 %v976
        %1018 = vmatprep.subr.mxu0 %v981
        %1019 = vmatpush1.msra.mxu0 %v980
        %1020 = vmatprep.subr.mxu0 %v985
        %1021 = vmatpush1.msra.mxu0 %v984
        %1022 = vmatprep.subr.mxu0 0.0
        %1023 = vmatpush1.msra.mxu0 0.0
        %1024 = vmatprep.subr.mxu0 0.0
        %1025 = vmatpush1.msra.mxu0 0.0
        %1026 = vmatprep.subr.mxu0 0.0
        %1027 = vmatpush1.msra.mxu0 0.0
        %1028 = vmatprep.subr.mxu0 0.0
        %1029 = vmatpush1.msra.mxu0 0.0
        %1030 = vmatprep.subr.mxu0 0.0
        %1031 = vmatpush1.msra.mxu0 0.0
        %1032 = vmatprep.subr.mxu0 0.0
        %1033 = vmatpush1.msra.mxu0 0.0
        %1034 = vmatprep.subr.mxu0 0.0
        %1035 = vmatpush1.msra.mxu0 0.0
        %1036 = vmatprep.subr.mxu0 0.0
        %1037 = vmatpush1.msra.mxu0 0.0
        %1038 = vmatprep.subr.mxu0 0.0
        %1039 = vmatpush1.msra.mxu0 0.0
        %1040 = vmatprep.subr.mxu0 0.0
        %1041 = vmatpush1.msra.mxu0 0.0
        %1042 = vmatprep.subr.mxu0 0.0
        %1043 = vmatpush1.msra.mxu0 0.0
        %1044 = vmatprep.subr.mxu0 0.0
        %1045 = vmatpush1.msra.mxu0 0.0
        %1046 = vmatprep.subr.mxu0 0.0
        %1047 = vmatpush1.msra.mxu0 0.0
        %1048 = vmatprep.subr.mxu0 0.0
        %1049 = vmatpush1.msra.mxu0 0.0
        %1050 = vmatprep.subr.mxu0 0.0
        %1051 = vmatpush1.msra.mxu0 0.0
        %1052 = vmatprep.subr.mxu0 0.0
        %1053 = vmatpush1.msra.mxu0 0.0
        %1054 = vmatprep.mubr.f32.mxu0 0.0
        %1055 = vmatmul.mubr.f32.gmra.mrb[0].mxu0 %v989
        %v1056 = vpop.f32.mrb[0].mxu0
        %v1057 = vadd.f32 0.0, %v1056
        %v1058 = vpop.f32.mrb[0].mxu0
        %v1059 = vadd.f32 0.0, %v1058
        %1060 = vdwg.mxu0
        %1061 = vmatprep.subr.mxu0 %v927
        %1062 = vmatpush1.msra.mxu0 %v926
        %1063 = vmatprep.subr.mxu0 %v931
        %1064 = vmatpush1.msra.mxu0 %v930
        %1065 = vmatprep.subr.mxu0 %v935
        %1066 = vmatpush1.msra.mxu0 %v934
        %1067 = vmatprep.subr.mxu0 %v939
        %1068 = vmatpush1.msra.mxu0 %v938
        %1069 = vmatprep.subr.mxu0 %v943
        %1070 = vmatpush1.msra.mxu0 %v942
        %1071 = vmatprep.subr.mxu0 %v947
        %1072 = vmatpush1.msra.mxu0 %v946
        %1073 = vmatprep.subr.mxu0 %v951
        %1074 = vmatpush1.msra.mxu0 %v950
        %1075 = vmatprep.subr.mxu0 %v955
        %1076 = vmatpush1.msra.mxu0 %v954
        %1077 = vmatprep.subr.mxu0 %v959
        %1078 = vmatpush1.msra.mxu0 %v958
        %1079 = vmatprep.subr.mxu0 %v963
        %1080 = vmatpush1.msra.mxu0 %v962
        %1081 = vmatprep.subr.mxu0 %v967
        %1082 = vmatpush1.msra.mxu0 %v966
        %1083 = vmatprep.subr.mxu0 %v971
        %1084 = vmatpush1.msra.mxu0 %v970
        %1085 = vmatprep.subr.mxu0 %v975
        %1086 = vmatpush1.msra.mxu0 %v974
        %1087 = vmatprep.subr.mxu0 %v979
        %1088 = vmatpush1.msra.mxu0 %v978
        %1089 = vmatprep.subr.mxu0 %v983
        %1090 = vmatpush1.msra.mxu0 %v982
        %1091 = vmatprep.subr.mxu0 %v987
        %1092 = vmatpush1.msra.mxu0 %v986
        %1093 = vmatprep.subr.mxu0 0.0
        %1094 = vmatpush1.msra.mxu0 0.0
        %1095 = vmatprep.subr.mxu0 0.0
        %1096 = vmatpush1.msra.mxu0 0.0
        %1097 = vmatprep.subr.mxu0 0.0
        %1098 = vmatpush1.msra.mxu0 0.0
        %1099 = vmatprep.subr.mxu0 0.0
        %1100 = vmatpush1.msra.mxu0 0.0
        %1101 = vmatprep.subr.mxu0 0.0
        %1102 = vmatpush1.msra.mxu0 0.0
        %1103 = vmatprep.subr.mxu0 0.0
        %1104 = vmatpush1.msra.mxu0 0.0
        %1105 = vmatprep.subr.mxu0 0.0
        %1106 = vmatpush1.msra.mxu0 0.0
        %1107 = vmatprep.subr.mxu0 0.0
        %1108 = vmatpush1.msra.mxu0 0.0
        %1109 = vmatprep.subr.mxu0 0.0
        %1110 = vmatpush1.msra.mxu0 0.0
        %1111 = vmatprep.subr.mxu0 0.0
        %1112 = vmatpush1.msra.mxu0 0.0
        %1113 = vmatprep.subr.mxu0 0.0
        %1114 = vmatpush1.msra.mxu0 0.0
        %1115 = vmatprep.subr.mxu0 0.0
        %1116 = vmatpush1.msra.mxu0 0.0
        %1117 = vmatprep.subr.mxu0 0.0
        %1118 = vmatpush1.msra.mxu0 0.0
        %1119 = vmatprep.subr.mxu0 0.0
        %1120 = vmatpush1.msra.mxu0 0.0
        %1121 = vmatprep.subr.mxu0 0.0
        %1122 = vmatpush1.msra.mxu0 0.0
        %1123 = vmatprep.subr.mxu0 0.0
        %1124 = vmatpush1.msra.mxu0 0.0
        %1125 = vmatprep.mubr.f32.mxu0 0.0
        %1126 = vmatmul.mubr.f32.gmra.mrb[0].mxu0 %v989
        %v1127 = vpop.f32.mrb[0].mxu0
        %v1128 = vadd.f32 0.0, %v1127
        %v1129 = vpop.f32.mrb[0].mxu0
        %v1130 = vadd.f32 0.0, %v1129
        %1131 = vdwg.mxu0
        %vm1132 = vcmp.ge.s32.totalorder %v421, 4
        %v1135 = vrot.slane %v1057, 4
        %v1136 = vrot.slane %v1059, 4
        %vm1139 = vcmask 1043456
        %v1140 = vsel %vm1139, %v1135, %v1135
        %v1141 = vsel %vm1139, %v1136, %v1136
        %v1142 = vsel %vm1132, 1, 0
        %vm1143 = vcmp.eq.s32.totalorder %v1142, 1
        %v1144 = vsel %vm1143, %v1140, 0.0
        %v1145 = vsel %vm1143, %v1141, 0.0
        %v1146 = vadd.f32 %v1144, %v1128
        %v1147 = vadd.f32 %v1145, %v1130
        %v1149 = vlaneseq
        %v1150 = vshrl.u32 %v1149, 7
        %v1151 = vsub.s32 0, %v1150
        %v1152 = vrot.slane %v988, %v1151
        %v1153 = vlaneseq
        %v1154 = vshrl.u32 %v1153, 7
        %v1155 = vsub.s32 1, %v1154
        %v1156 = vrot.slane %v988, %v1155
        %v1159 = vadd.f32 %v1146, %v1152
        %v1160 = vadd.f32 %v1147, %v1156
        %v1161 = vtanh.pop %v1159
        %v1162 = vxor.u32 %v1160, 2147483648
        %v1163 = vmul.f32 %v1162, 1.442695
        %v1164 = vpow.pop %v1163
        %v1165 = vadd.f32 %v1164, 1.0
        %v1166 = vrcp.pop %v1165
        %v1167 = vmul.f32 1.0, %v1166
        %v1168 = vmul.f32 %v1161, %v1167
        %1170 = vrot.lane.b32.xlu0 %v1168, 24
        %v1171 = vpop.permute.xlu0 %1170
        %vm1173 = vcmask 261312
        %1174 = vst.msk [vmem:[%s405] sm:$0xff] %vm1173, %v1171
        %v1175 = vld [vmem:[#allocation10] sm:$0xff]
        %v1176 = vld [vmem:[#allocation10 + $0x8] sm:$0xff]
        %v1177 = vld [vmem:[#allocation10 + $0x10] sm:$0xff]
        %v1178 = vld [vmem:[#allocation10 + $0x18] sm:$0xff]
        %v1179 = vld [vmem:[#allocation10 + $0x20] sm:$0xff]
        %v1180 = vld [vmem:[#allocation10 + $0x28] sm:$0xff]
        %v1181 = vld [vmem:[#allocation10 + $0x30] sm:$0xff]
        %v1182 = vld [vmem:[#allocation10 + $0x38] sm:$0xff]
        %v1183 = vld [vmem:[#allocation10 + $0x40] sm:$0xff]
        %v1184 = vld [vmem:[#allocation10 + $0x48] sm:$0xff]
        %v1185 = vld [vmem:[#allocation10 + $0x50] sm:$0xff]
        %v1186 = vld [vmem:[#allocation10 + $0x58] sm:$0xff]
        %v1187 = vld [vmem:[#allocation10 + $0x60] sm:$0xff]
        %v1188 = vld [vmem:[#allocation10 + $0x68] sm:$0xff]
        %v1189 = vld [vmem:[#allocation10 + $0x70] sm:$0xff]
        %v1190 = vld [vmem:[#allocation10 + $0x78] sm:$0xff]
        %v1191 = vld [vmem:[#allocation10 + $0x80] sm:$0xff]
        %v1192 = vld [vmem:[#allocation10 + $0x88] sm:$0xff]
        %v1193 = vld [vmem:[#allocation10 + $0x90] sm:$0xff]
        %v1194 = vld [vmem:[#allocation10 + $0x98] sm:$0xff]
        %v1195 = vld [vmem:[#allocation10 + $0xa0] sm:$0xff]
        %v1196 = vld [vmem:[#allocation10 + $0xa8] sm:$0xff]
        %v1197 = vld [vmem:[#allocation10 + $0xb0] sm:$0xff]
        %v1198 = vld [vmem:[#allocation10 + $0xb8] sm:$0xff]
        %v1199 = vld [vmem:[#allocation10 + $0xc0] sm:$0xff]
        %v1200 = vld [vmem:[#allocation10 + $0xc8] sm:$0xff]
        %v1201 = vld [vmem:[#allocation10 + $0xd0] sm:$0xff]
        %v1202 = vld [vmem:[#allocation10 + $0xd8] sm:$0xff]
        %v1203 = vld [vmem:[#allocation10 + $0xe0] sm:$0xff]
        %v1204 = vld [vmem:[#allocation10 + $0xe8] sm:$0xff]
        %v1205 = vld [vmem:[#allocation10 + $0xf0] sm:$0xff]
        %v1206 = vld [vmem:[#allocation10 + $0xf8] sm:$0xff]
        %v1207 = vld [vmem:[%s8] sm:$0x3]
        %v1208 = vld [vmem:[%s405] sm:$0xff]
        %v1210 = vlaneseq
        %v1211 = vshrl.u32 %v1210, 7
        %v1212 = vsub.s32 0, %v1211
        %v1213 = vrot.slane %v1207, %v1212
        %v1214 = vlaneseq
        %v1215 = vshrl.u32 %v1214, 7
        %v1216 = vsub.s32 1, %v1215
        %v1217 = vrot.slane %v1207, %v1216
        %1220 = vmatprep.subr.mxu0 %v1176
        %1221 = vmatpush1.msra.mxu0 %v1175
        %1222 = vmatprep.subr.mxu0 %v1178
        %1223 = vmatpush1.msra.mxu0 %v1177
        %1224 = vmatprep.subr.mxu0 %v1180
        %1225 = vmatpush1.msra.mxu0 %v1179
        %1226 = vmatprep.subr.mxu0 %v1182
        %1227 = vmatpush1.msra.mxu0 %v1181
        %1228 = vmatprep.subr.mxu0 %v1184
        %1229 = vmatpush1.msra.mxu0 %v1183
        %1230 = vmatprep.subr.mxu0 %v1186
        %1231 = vmatpush1.msra.mxu0 %v1185
        %1232 = vmatprep.subr.mxu0 %v1188
        %1233 = vmatpush1.msra.mxu0 %v1187
        %1234 = vmatprep.subr.mxu0 %v1190
        %1235 = vmatpush1.msra.mxu0 %v1189
        %1236 = vmatprep.subr.mxu0 %v1192
        %1237 = vmatpush1.msra.mxu0 %v1191
        %1238 = vmatprep.subr.mxu0 %v1194
        %1239 = vmatpush1.msra.mxu0 %v1193
        %1240 = vmatprep.subr.mxu0 %v1196
        %1241 = vmatpush1.msra.mxu0 %v1195
        %1242 = vmatprep.subr.mxu0 %v1198
        %1243 = vmatpush1.msra.mxu0 %v1197
        %1244 = vmatprep.subr.mxu0 %v1200
        %1245 = vmatpush1.msra.mxu0 %v1199
        %1246 = vmatprep.subr.mxu0 %v1202
        %1247 = vmatpush1.msra.mxu0 %v1201
        %1248 = vmatprep.subr.mxu0 %v1204
        %1249 = vmatpush1.msra.mxu0 %v1203
        %1250 = vmatprep.subr.mxu0 %v1206
        %1251 = vmatpush1.msra.mxu0 %v1205
        %1252 = vmatprep.subr.mxu0 0.0
        %1253 = vmatpush1.msra.mxu0 0.0
        %1254 = vmatprep.subr.mxu0 0.0
        %1255 = vmatpush1.msra.mxu0 0.0
        %1256 = vmatprep.subr.mxu0 0.0
        %1257 = vmatpush1.msra.mxu0 0.0
        %1258 = vmatprep.subr.mxu0 0.0
        %1259 = vmatpush1.msra.mxu0 0.0
        %1260 = vmatprep.subr.mxu0 0.0
        %1261 = vmatpush1.msra.mxu0 0.0
        %1262 = vmatprep.subr.mxu0 0.0
        %1263 = vmatpush1.msra.mxu0 0.0
        %1264 = vmatprep.subr.mxu0 0.0
        %1265 = vmatpush1.msra.mxu0 0.0
        %1266 = vmatprep.subr.mxu0 0.0
        %1267 = vmatpush1.msra.mxu0 0.0
        %1268 = vmatprep.subr.mxu0 0.0
        %1269 = vmatpush1.msra.mxu0 0.0
        %1270 = vmatprep.subr.mxu0 0.0
        %1271 = vmatpush1.msra.mxu0 0.0
        %1272 = vmatprep.subr.mxu0 0.0
        %1273 = vmatpush1.msra.mxu0 0.0
        %1274 = vmatprep.subr.mxu0 0.0
        %1275 = vmatpush1.msra.mxu0 0.0
        %1276 = vmatprep.subr.mxu0 0.0
        %1277 = vmatpush1.msra.mxu0 0.0
        %1278 = vmatprep.subr.mxu0 0.0
        %1279 = vmatpush1.msra.mxu0 0.0
        %1280 = vmatprep.subr.mxu0 0.0
        %1281 = vmatpush1.msra.mxu0 0.0
        %1282 = vmatprep.subr.mxu0 0.0
        %1283 = vmatpush1.msra.mxu0 0.0
        %1284 = vmatprep.mubr.f32.mxu0 0.0
        %1285 = vmatmul.mubr.f32.gmra.mrb[0].mxu0 %v1208
        %v1286 = vpop.f32.mrb[0].mxu0
        %v1287 = vadd.f32 %v1213, %v1286
        %v1288 = vpop.f32.mrb[0].mxu0
        %v1289 = vadd.f32 %v1217, %v1288
        %1290 = vdwg.mxu0
        %v1291 = vtanh.pop %v1287
        %v1292 = vxor.u32 %v1289, 2147483648
        %v1293 = vmul.f32 %v1292, 1.442695
        %v1294 = vpow.pop %v1293
        %v1295 = vadd.f32 %v1294, 1.0
        %v1296 = vrcp.pop %v1295
        %v1297 = vmul.f32 1.0, %v1296
        %v1298 = vmul.f32 %v1291, %v1297
        %1300 = vrot.lane.b32.xlu0 %v1298, 32
        %v1301 = vpop.permute.xlu0 %1300
        %vm1303 = vcmask 326912
        %1304 = vst.msk [vmem:[%s405] sm:$0xff] %vm1303, %v1301
        %s1305 = sand.u32 %s230, 1
        %s1306 = scalar_lea.sflag [#allocation4], %s1305
        %s1307 = sand.u32 %s230, 1
        %s1308 = smul.addr %s1307, 8
        %s1309 = scalar_lea.vmem [#allocation11], %s1308
        // Predicated region
        $region77: #{tpu_custom_call.1} parent=55 // pred_check
          %p1310 = pneg %p240
        $region78: #{tpu_custom_call.1} parent=55 // pred_check_branch
          %1312 = sbr.rel (%p1310) target = $region80
        $region79: #{tpu_custom_call.1} parent=55 // pred_region
          %s1314 = ssub.s32 128, 128
          %1315 = vsyncadd %s1306, %s1314
          %s1316 = smul.addr %s28, 128
          %s1317 = scalar_lea.hbm %s9, %s1316
          %s1319 = sshll.u32 %s1309, 4
          %s1320 = int_to_ptr.vmem [resolvable:$true] %s1319
          %1322 = dma.vmem_to_hbm [thread:$0]  %s1320, 128, %s1317, %s1306
        $region80: #{tpu_custom_call.1} parent=55 // pred_fallthru
          _
      $region56: #{tpu_custom_call.1} parent=5 // pred_fallthru
        _
      %p1323 = scmp.le.s32.totalorder 2, %s23
      // Predicated region
      $region81: #{tpu_custom_call.1} parent=5 // pred_check
        %p1324 = pneg %p1323
      $region82: #{tpu_custom_call.1} parent=5 // pred_check_branch
        %1326 = sbr.rel (%p1324) target = $region84
      $region83: #{tpu_custom_call.1} parent=5 // pred_region
        %s1327 = ssub.s32 %s23, 2
        // Predicated region
        $region85: #{tpu_custom_call.1} parent=83 // pred_check
          %p1328 = pneg %p246
        $region86: #{tpu_custom_call.1} parent=83 // pred_check_branch
          %1330 = sbr.rel (%p1328) target = $region88
        $region87: #{tpu_custom_call.1} parent=83 // pred_region
          %s1331 = sand.u32 %s231, 1
          %s1332 = scalar_lea.sflag [#allocation4], %s1331
          %s1333 = sand.u32 %s231, 1
          %s1334 = smul.addr %s1333, 8
          %s1335 = scalar_lea.vmem [#allocation11], %s1334
          %1336 = dma.done %s1332, 128
        $region88: #{tpu_custom_call.1} parent=83 // pred_fallthru
          _
      $region84: #{tpu_custom_call.1} parent=5 // pred_fallthru
        _
    $region6: #{tpu_custom_call.1} parent=1 // loop_footer
      %s27 = sadd.s32 1, %s23
    $region7: #{tpu_custom_call.1} parent=1 // loop_footer_branch
      %22 = sbr.rel target = $region3
    $region8: #{tpu_custom_call.1} parent=1 // loop_exit
      _
    %1337 = vsyncpa [#allocation3], 1
    %s1338 = scalar_lea.sflag [#allocation3], 1
    %1339 = vsyncpa %s1338, 1
    %1340 = vsyncpa [#allocation6], 1
    %1341 = vsyncpa [#allocation9], 1
    %1342 = vsyncpa [#allocation4], 1
    %s1343 = scalar_lea.sflag [#allocation4], 1
    %1344 = vsyncpa %s1343, 1

</llo_original>
